<compile_context>
chip_gen: v7x
topology: tpu7x:2x2x1
jax: 0.10.0
libtpu: 0.0.40
codegen_flags: <defaults>
</compile_context>

<pallas_src>
import jax
import jax.numpy as jnp
from jax.experimental import pallas as pl
from jax.experimental.pallas import tpu as pltpu

LEAKY_SLOPE = 0.2


def _encoder_kernel(x_ref, w1_ref, b1_ref, w2_ref, b2_ref, w3_ref,
                    out_ref, acc_ref):
    """Fused 3-layer MLP encoder.

    grid = (batch_blocks, k_blocks).  k (the D0 reduction of layer 1) is the
    innermost, sequential ("arbitrary") axis; batch blocks are "parallel".
    Layer-1 partials accumulate into acc_ref (f32 VMEM scratch, bias folded
    into the k==0 init).  At the last k block the LeakyReLU + layer-2 +
    layer-3 epilogue runs entirely from VMEM and writes the lane-padded
    output tile.
    """
    k = pl.program_id(1)

    @pl.when(k == 0)
    def _():
        # Fold the layer-1 bias into the accumulator init.
        acc_ref[...] = jnp.broadcast_to(b1_ref[...], acc_ref.shape)

    # Layer-1 partial matmul: bf16 operands on the MXU, f32 accumulation.
    acc_ref[...] += jnp.dot(
        x_ref[...].astype(jnp.bfloat16),
        w1_ref[...],
        preferred_element_type=jnp.float32,
    )

    @pl.when(k == pl.num_programs(1) - 1)
    def _():
        h1 = acc_ref[...]                                  # (TM, D1) f32
        h1 = jnp.maximum(h1, LEAKY_SLOPE * h1)             # LeakyReLU(0.2)

        h2 = jnp.dot(h1.astype(jnp.bfloat16), w2_ref[...],
                     preferred_element_type=jnp.float32)
        h2 = h2 + b2_ref[...]
        h2 = jnp.maximum(h2, LEAKY_SLOPE * h2)             # LeakyReLU(0.2)

        e3 = jnp.dot(h2.astype(jnp.bfloat16), w3_ref[...],
                     preferred_element_type=jnp.float32)
        out_ref[...] = e3.astype(out_ref.dtype)


def _round_up(x, m):
    return ((x + m - 1) // m) * m


def _pick_block_k(d0):
    # Largest clean divisor so W1 streams in (TK, D1) tiles.
    for cand in (512, 256, 128):
        if d0 % cand == 0:
            return cand
    return d0


def encoder_cnn_forward(image, params):
    """image: (B, nc, H, W) float32.  Returns (B, embed_size) float32."""
    w1, b1, w2, b2, w3 = params

    B = image.shape[0]
    x = image.reshape(B, -1).astype(jnp.float32)           # (B, D0)
    D0 = x.shape[1]
    D1 = w1.shape[1]
    D2 = w2.shape[1]
    E = w3.shape[1]

    # bf16 weights (f32 accumulation in-kernel); biases stay f32.
    w1 = w1.astype(jnp.bfloat16)
    w2 = w2.astype(jnp.bfloat16)
    w3 = w3.astype(jnp.bfloat16)
    b1 = b1.astype(jnp.float32)
    b2 = b2.astype(jnp.float32)

    # Sublane-align the batch (zero rows padded, sliced off at the end).
    TM = 8 if B <= 8 else 128
    B_pad = _round_up(B, TM)
    if B_pad != B:
        x = jnp.pad(x, ((0, B_pad - B), (0, 0)))

    # Lane-dense output: pad embed dim to a multiple of 128 (unmasked vst).
    E_pad = _round_up(E, 128)
    if E_pad != E:
        w3 = jnp.pad(w3, ((0, 0), (0, E_pad - E)))

    # Tile the layer-1 reduction (K = D0) so W1 is a pipelined stream.
    TK = _pick_block_k(D0)
    n_bm = B_pad // TM
    n_k = D0 // TK

    out_padded = pl.pallas_call(
        _encoder_kernel,
        out_shape=jax.ShapeDtypeStruct((B_pad, E_pad), jnp.float32),
        grid_spec=pltpu.PrefetchScalarGridSpec(
            num_scalar_prefetch=0,
            grid=(n_bm, n_k),                               # reduction axis last
            in_specs=[
                pl.BlockSpec((TM, TK), lambda i, k: (i, k)),      # x block
                pl.BlockSpec((TK, D1), lambda i, k: (k, 0)),      # W1 stream (bf16)
                pl.BlockSpec((1, D1), lambda i, k: (0, 0)),       # b1
                pl.BlockSpec((D1, D2), lambda i, k: (0, 0)),      # W2 (bf16)
                pl.BlockSpec((1, D2), lambda i, k: (0, 0)),       # b2
                pl.BlockSpec((D2, E_pad), lambda i, k: (0, 0)),   # W3 (bf16, lane-padded)
            ],
            out_specs=pl.BlockSpec((TM, E_pad), lambda i, k: (i, 0)),
            scratch_shapes=[pltpu.VMEM((TM, D1), jnp.float32)],   # layer-1 accumulator
        ),
        compiler_params=pltpu.CompilerParams(
            dimension_semantics=("parallel", "arbitrary"),
        ),
    )(x, w1, b1, w2, b2, w3)

    return out_padded[:B, :E]


def init_params(key, nc, image_size, embed_size):
    """Deterministic init mimicking nn.Linear (uniform +-1/sqrt(fan_in)).

    Weights are stored pre-transposed as (in_features, out_features), f32.
    """
    D0 = nc * image_size * image_size
    D1 = D0 // 2
    D2 = D0 // 4

    k1, k2, k3, k4, k5 = jax.random.split(key, 5)

    def lin(kw, kb, fan_in, fan_out, bias=True):
        bound = 1.0 / jnp.sqrt(jnp.float32(fan_in))
        w = jax.random.uniform(kw, (fan_in, fan_out), jnp.float32, -bound, bound)
        if bias:
            b = jax.random.uniform(kb, (1, fan_out), jnp.float32, -bound, bound)
        else:
            b = None
        return w, b

    w1, b1 = lin(k1, k2, D0, D1)
    w2, b2 = lin(k3, k4, D1, D2)
    w3, _ = lin(k5, k5, D2, embed_size, bias=False)
    return (w1, b1, w2, b2, w3)


def reference_forward(image, params):
    """Pure-JAX f32 reference matching the PyTorch forward (normalization=False)."""
    w1, b1, w2, b2, w3 = params
    x = image.reshape(image.shape[0], -1)
    h1 = x @ w1 + b1
    h1 = jnp.where(h1 > 0, h1, 0.2 * h1)
    h2 = h1 @ w2 + b2
    h2 = jnp.where(h2 > 0, h2, 0.2 * h2)
    return h2 @ w3


if __name__ == "__main__":
    # Small shapes consistent with the module:
    #   nc=4 channels, image_size=16  ->  flattened dim 4*16*16 = 1024
    #   hidden dims 512, 256; embed_size=32; batch=2
    B, nc, image_size, embed_size = 2, 4, 16, 32

    key = jax.random.PRNGKey(0)
    k_img, k_par = jax.random.split(key)

    image = jax.random.normal(k_img, (B, nc, image_size, image_size), jnp.float32)
    params = init_params(k_par, nc, image_size, embed_size)

    out = encoder_cnn_forward(image, params)
    out = jax.block_until_ready(out)

    ref = reference_forward(image, params)
    assert out.shape == (B, embed_size), out.shape
    # Kernel uses bf16 weights/matmul operands with f32 accumulation, reference
    # is pure f32 -> tolerance reflects bf16 rounding (errors here are ~1e-3).
    max_err = float(jnp.max(jnp.abs(out - ref)))
    assert jnp.allclose(out, ref, atol=2e-2, rtol=2e-2), f"mismatch vs reference, max_err={max_err}"

    print("KERNEL_OK")
</pallas_src>

<mosaic_0001>
module attributes {stable_mosaic.version = 11 : i64} {
  func.func @_encoder_kernel(%arg0: i32, %arg1: i32, %arg2: memref<8x512xf32, #tpu.memory_space<vmem>>, %arg3: memref<512x512xbf16, #tpu.memory_space<vmem>>, %arg4: memref<1x512xf32, #tpu.memory_space<vmem>>, %arg5: memref<512x256xbf16, #tpu.memory_space<vmem>>, %arg6: memref<1x256xf32, #tpu.memory_space<vmem>>, %arg7: memref<256x128xbf16, #tpu.memory_space<vmem>>, %arg8: memref<8x128xf32, #tpu.memory_space<vmem>>, %arg9: memref<8x512xf32, #tpu.memory_space<vmem>>) attributes {dimension_semantics = [#tpu.dimension_semantics<parallel>, #tpu.dimension_semantics<arbitrary>], iteration_bounds = array<i64: 1, 2>, scalar_prefetch = 0 : i64, scratch_operands = 1 : i64, tpu.core_type = #tpu.core_type<tc>, window_params = [{transform_indices = @transform_0, window_bounds = array<i64: 8, 512>}, {transform_indices = @transform_1, window_bounds = array<i64: 512, 512>}, {pipeline_mode = #tpu.pipeline_mode<synchronous>, transform_indices = @transform_2, window_bounds = array<i64: 1, 512>}, {pipeline_mode = #tpu.pipeline_mode<synchronous>, transform_indices = @transform_3, window_bounds = array<i64: 512, 256>}, {pipeline_mode = #tpu.pipeline_mode<synchronous>, transform_indices = @transform_4, window_bounds = array<i64: 1, 256>}, {pipeline_mode = #tpu.pipeline_mode<synchronous>, transform_indices = @transform_5, window_bounds = array<i64: 256, 128>}, {transform_indices = @transform_6, window_bounds = array<i64: 8, 128>}]} {
    %c0_i32 = arith.constant 0 : i32
    %0 = arith.cmpi eq, %arg1, %c0_i32 : i32
    %1 = arith.extui %0 : i1 to i32
    %c0_i32_0 = arith.constant 0 : i32
    %2 = arith.cmpi ne, %1, %c0_i32_0 : i32
    scf.if %2 {
      %c0_9 = arith.constant 0 : index
      %c0_10 = arith.constant 0 : index
      %13 = vector.load %arg4[%c0_9, %c0_10] : memref<1x512xf32, #tpu.memory_space<vmem>>, vector<1x512xf32>
      %14 = vector.shape_cast %13 : vector<1x512xf32> to vector<1x512xf32>
      %15 = vector.broadcast %14 : vector<1x512xf32> to vector<8x512xf32>
      %c0_11 = arith.constant 0 : index
      %c0_12 = arith.constant 0 : index
      %16 = vector.load %arg9[%c0_11, %c0_12] : memref<8x512xf32, #tpu.memory_space<vmem>>, vector<8x512xf32>
      tpu.vector_store %arg9[%c0_11, %c0_12], %15 {strides = array<i32>} : memref<8x512xf32, #tpu.memory_space<vmem>>, vector<8x512xf32>,
    } else {
    }
    %c0 = arith.constant 0 : index
    %c0_1 = arith.constant 0 : index
    %3 = vector.load %arg9[%c0, %c0_1] : memref<8x512xf32, #tpu.memory_space<vmem>>, vector<8x512xf32>
    %c0_2 = arith.constant 0 : index
    %c0_3 = arith.constant 0 : index
    %4 = vector.load %arg2[%c0_2, %c0_3] : memref<8x512xf32, #tpu.memory_space<vmem>>, vector<8x512xf32>
    %5 = arith.truncf %4 : vector<8x512xf32> to vector<8x512xbf16>
    %c0_4 = arith.constant 0 : index
    %c0_5 = arith.constant 0 : index
    %6 = vector.load %arg3[%c0_4, %c0_5] : memref<512x512xbf16, #tpu.memory_space<vmem>>, vector<512x512xbf16>
    %cst = arith.constant dense<0.000000e+00> : vector<8x512xf32>
    %7 = tpu.matmul %5, %6, %cst {dimension_numbers = #tpu.dot_dimension_numbers<[1], [0], [0], [1], [0, 0, 1, 1], [], []>} : vector<8x512xbf16>, vector<512x512xbf16>, vector<8x512xf32> -> vector<8x512xf32>
    %8 = arith.addf %3, %7 : vector<8x512xf32>
    %c0_6 = arith.constant 0 : index
    %c0_7 = arith.constant 0 : index
    %9 = vector.load %arg9[%c0_6, %c0_7] : memref<8x512xf32, #tpu.memory_space<vmem>>, vector<8x512xf32>
    tpu.vector_store %arg9[%c0_6, %c0_7], %8 {strides = array<i32>} : memref<8x512xf32, #tpu.memory_space<vmem>>, vector<8x512xf32>,
    %c1_i32 = arith.constant 1 : i32
    %10 = arith.cmpi eq, %arg1, %c1_i32 : i32
    %11 = arith.extui %10 : i1 to i32
    %c0_i32_8 = arith.constant 0 : i32
    %12 = arith.cmpi ne, %11, %c0_i32_8 : i32
    scf.if %12 {
      %c0_9 = arith.constant 0 : index
      %c0_10 = arith.constant 0 : index
      %13 = vector.load %arg9[%c0_9, %c0_10] : memref<8x512xf32, #tpu.memory_space<vmem>>, vector<8x512xf32>
      %cst_11 = arith.constant 2.000000e-01 : f32
      %14 = vector.broadcast %cst_11 : f32 to vector<8x512xf32>
      %15 = arith.mulf %14, %13 : vector<8x512xf32>
      %16 = arith.maximumf %13, %15 : vector<8x512xf32>
      %17 = arith.truncf %16 : vector<8x512xf32> to vector<8x512xbf16>
      %c0_12 = arith.constant 0 : index
      %c0_13 = arith.constant 0 : index
      %18 = vector.load %arg5[%c0_12, %c0_13] : memref<512x256xbf16, #tpu.memory_space<vmem>>, vector<512x256xbf16>
      %cst_14 = arith.constant dense<0.000000e+00> : vector<8x256xf32>
      %19 = tpu.matmul %17, %18, %cst_14 {dimension_numbers = #tpu.dot_dimension_numbers<[1], [0], [0], [1], [0, 0, 1, 1], [], []>} : vector<8x512xbf16>, vector<512x256xbf16>, vector<8x256xf32> -> vector<8x256xf32>
      %c0_15 = arith.constant 0 : index
      %c0_16 = arith.constant 0 : index
      %20 = vector.load %arg6[%c0_15, %c0_16] : memref<1x256xf32, #tpu.memory_space<vmem>>, vector<1x256xf32>
      %21 = vector.broadcast %20 : vector<1x256xf32> to vector<8x256xf32>
      %22 = arith.addf %19, %21 : vector<8x256xf32>
      %cst_17 = arith.constant 2.000000e-01 : f32
      %23 = vector.broadcast %cst_17 : f32 to vector<8x256xf32>
      %24 = arith.mulf %23, %22 : vector<8x256xf32>
      %25 = arith.maximumf %22, %24 : vector<8x256xf32>
      %26 = arith.truncf %25 : vector<8x256xf32> to vector<8x256xbf16>
      %c0_18 = arith.constant 0 : index
      %c0_19 = arith.constant 0 : index
      %27 = vector.load %arg7[%c0_18, %c0_19] : memref<256x128xbf16, #tpu.memory_space<vmem>>, vector<256x128xbf16>
      %cst_20 = arith.constant dense<0.000000e+00> : vector<8x128xf32>
      %28 = tpu.matmul %26, %27, %cst_20 {dimension_numbers = #tpu.dot_dimension_numbers<[1], [0], [0], [1], [0, 0, 1, 1], [], []>} : vector<8x256xbf16>, vector<256x128xbf16>, vector<8x128xf32> -> vector<8x128xf32>
      %c0_21 = arith.constant 0 : index
      %c0_22 = arith.constant 0 : index
      %29 = vector.load %arg8[%c0_21, %c0_22] : memref<8x128xf32, #tpu.memory_space<vmem>>, vector<8x128xf32>
      tpu.vector_store %arg8[%c0_21, %c0_22], %28 {strides = array<i32>} : memref<8x128xf32, #tpu.memory_space<vmem>>, vector<8x128xf32>,
    } else {
    }
    return
  }
  func.func @transform_0(%arg0: i32, %arg1: i32) -> (i32, i32) {
    %c0_i32 = arith.constant 0 : i32
    return %arg0, %arg1 : i32, i32
  }
  func.func @transform_1(%arg0: i32, %arg1: i32) -> (i32, i32) {
    %c0_i32 = arith.constant 0 : i32
    %c0_i32_0 = arith.constant 0 : i32
    return %arg1, %c0_i32 : i32, i32
  }
  func.func @transform_2(%arg0: i32, %arg1: i32) -> (i32, i32) {
    %c0_i32 = arith.constant 0 : i32
    %c0_i32_0 = arith.constant 0 : i32
    %c0_i32_1 = arith.constant 0 : i32
    return %c0_i32, %c0_i32_0 : i32, i32
  }
  func.func @transform_3(%arg0: i32, %arg1: i32) -> (i32, i32) {
    %c0_i32 = arith.constant 0 : i32
    %c0_i32_0 = arith.constant 0 : i32
    %c0_i32_1 = arith.constant 0 : i32
    return %c0_i32, %c0_i32_0 : i32, i32
  }
  func.func @transform_4(%arg0: i32, %arg1: i32) -> (i32, i32) {
    %c0_i32 = arith.constant 0 : i32
    %c0_i32_0 = arith.constant 0 : i32
    %c0_i32_1 = arith.constant 0 : i32
    return %c0_i32, %c0_i32_0 : i32, i32
  }
  func.func @transform_5(%arg0: i32, %arg1: i32) -> (i32, i32) {
    %c0_i32 = arith.constant 0 : i32
    %c0_i32_0 = arith.constant 0 : i32
    %c0_i32_1 = arith.constant 0 : i32
    return %c0_i32, %c0_i32_0 : i32, i32
  }
  func.func @transform_6(%arg0: i32, %arg1: i32) -> (i32, i32) {
    %c0_i32 = arith.constant 0 : i32
    %c0_i32_0 = arith.constant 0 : i32
    return %arg0, %c0_i32 : i32, i32
  }
}

</mosaic_0001>

<llo_original>
// kernel: tpu_custom_call.1
$region0: #{tpu_custom_call.1}
  #allocation0 [shape = 'u32[]', space=smem, size = 0x4, offset = 0x4, fixed_abs, tag = 'smem constant byte address 0x4 - core index']
  #allocation1 [shape = 'u32[144,128]{1,0:T(1,128)}', space=vmem, size = 0x12000, scoped, tag = 'internal scratch']
  #allocation2 [shape = 'f32[8,512]{1,0:T(8,128)}', space=vmem, size = 0x4000, scoped, tag = 'scratch operand']
  %s0 = inlined_call_operand.hbm [shape: f32[8,1024], index: 0, kind: input, shape index: {}]
  %s1 = inlined_call_operand.hbm [shape: bf16[1024,512], index: 1, kind: input, shape index: {}]
  %s2 = inlined_call_operand.vmem [shape: f32[1,512], index: 2, kind: input, shape index: {}]
  %s3 = inlined_call_operand.hbm [shape: bf16[512,256], index: 3, kind: input, shape index: {}]
  %s4 = inlined_call_operand.vmem [shape: f32[1,256], index: 4, kind: input, shape index: {}]
  %s5 = inlined_call_operand.hbm [shape: bf16[256,128], index: 5, kind: input, shape index: {}]
  %s6 = inlined_call_operand.hbm [shape: f32[8,128], index: 6, kind: output, shape index: {}]
  %s7 = sld [smem:[#allocation0]]
  $region81: #{tpu_custom_call.1} parent=0
    _
  %s9 = ssub.s32 1, %s7
  %s10 = scalar_select 0, %s9, %s7
  $region1: #{tpu_custom_call.1} parent=0
    #allocation3 [shape = 'u8[32768]{0}', space=vmem, size = 0x8000, scoped, tag = 'input window, operand 0']
    #allocation4 [shape = 's32[2]{0}', space=sflag, size = 0x8, scoped, tag = 'scoped memory for tpu_custom_call.1']
    #allocation5 [shape = 's32[2]{0}', space=sflag, size = 0x8, scoped, tag = 'scoped memory for tpu_custom_call.1']
    #allocation6 [shape = 'u8[1048576]{0}', space=vmem, size = 0x100000, scoped, tag = 'input window, operand 1']
    #allocation7 [shape = 's32[2]{0}', space=sflag, size = 0x8, scoped, tag = 'scoped memory for tpu_custom_call.1']
    #allocation8 [shape = 'u8[262144]{0}', space=vmem, size = 0x40000, scoped, tag = 'input window, operand 3, single buffered']
    #allocation9 [shape = 'u8[65536]{0}', space=vmem, size = 0x10000, scoped, tag = 'input window, operand 5, single buffered']
    #allocation10 [shape = 's32[1]{0}', space=sflag, size = 0x4, scoped, tag = 'scoped memory for tpu_custom_call.1']
    #allocation11 [shape = 'u8[4096]{0}', space=vmem, size = 0x1000, scoped, tag = 'output window, operand 0, single buffered']
    %11 = vsyncpa [#allocation4], 0
    %s12 = scalar_lea.sflag [#allocation4], 1
    %13 = vsyncpa %s12, 0
    %14 = vsyncpa [#allocation7], 0
    %s15 = scalar_lea.sflag [#allocation7], 1
    %16 = vsyncpa %s15, 0
    %17 = vsyncpa [#allocation10], 0
    %18 = vsyncpa [#allocation5], 0
    loop: start=0, step=1, limit=4
    $region2: #{tpu_custom_call.1} parent=1 // loop_pre_header
      _
    $region3: #{tpu_custom_call.1} parent=1 // loop_header
      %s20 = sphi 0, %s24
      %p21 = scmp.ge.s32.totalorder %s20, 4
      %s27 = sphi 0, %s39
      %s28 = sphi 0, %s35
      %s29 = sphi 0, %s27
      %s30 = sphi 0, %s28
      %s31 = sphi 0, %s29
      %s32 = sphi 0, %s30
      %s44 = sphi 0, %s46
      %s47 = sphi 0, %s44
      %s48 = sphi 0, %s47
      %s64 = sphi 0, %s48
      %s70 = sphi 0, %s72
      %s73 = sphi 0, %s70
      %s74 = sphi 0, %s73
      %s90 = sphi 0, %s74
      %s94 = sphi 0, %s94
      %s96 = sphi 0, %s94
      %s97 = sphi 0, %s96
      %s111 = sphi 0, %s97
      %s115 = sphi 0, %s115
      %s117 = sphi 0, %s115
      %s118 = sphi 0, %s117
      %s132 = sphi 0, %s118
      %s136 = sphi 0, %s136
      %s138 = sphi 0, %s136
      %s139 = sphi 0, %s138
      %s153 = sphi 0, %s139
      %s157 = sphi 0, %s157
      %s159 = sphi 0, %s157
      %s160 = sphi 0, %s159
      %s174 = sphi 0, %s160
      %s180 = sphi 0, %s182
      %s183 = sphi 0, %s180
      %s184 = sphi 0, %s183
      %s200 = sphi 0, %s184
    $region4: #{tpu_custom_call.1} parent=1 // loop_header_branch
      %23 = sbr.rel (%p21) target = $region8
    $region5: #{tpu_custom_call.1} parent=1 // loop_body
      %s25 = ssub.s32 %s20, 1
      %s26 = ssub.s32 %s20, 2
      %s33 = sadd.s32 1, %s28
      %p34 = scmp.ge.s32.totalorder %s33, 2
      %s35 = scalar_select %p34, 0, %s33
      %s36 = sadd.s32 1, %s27
      %s37 = scalar_select %p34, %s36, %s27
      %p38 = scmp.ge.s32.totalorder %s37, 1
      %s39 = scalar_select %p38, 0, %s37
      %s40 = ssub.s32 %s27, %s39
      %s41 = ssub.s32 %s28, %s35
      %s42 = sor.u32 %s40, %s41
      %p43 = scmp.eq.s32.totalorder %s42, 0
      %s45 = sadd.s32 %s44, 1
      %s46 = scalar_select %p43, %s44, %s45
      %p49 = pneg %p43
      %p50 = scmp.eq.s32.totalorder %s20, 1
      %p51 = por %p49, %p50
      %p52 = scmp.ne.s32.totalorder %s44, %s47
      %p53 = scmp.eq.s32.totalorder %s20, 0
      %p54 = por %p52, %p53
      %p55 = scmp.ne.s32.totalorder %s44, %s47
      %p56 = scmp.eq.s32.totalorder %s25, 1
      %p57 = por %p55, %p56
      %p58 = scmp.ne.s32.totalorder %s47, %s48
      %p59 = scmp.eq.s32.totalorder %s25, 0
      %p60 = por %p58, %p59
      %p61 = scmp.ne.s32.totalorder %s47, %s48
      %p62 = scmp.eq.s32.totalorder %s26, 1
      %p63 = por %p61, %p62
      %p65 = scmp.ne.s32.totalorder %s48, %s64
      %p66 = scmp.eq.s32.totalorder %s26, 0
      %p67 = por %p65, %p66
      %s68 = ssub.s32 %s28, %s35
      %p69 = scmp.eq.s32.totalorder %s68, 0
      %s71 = sadd.s32 %s70, 1
      %s72 = scalar_select %p69, %s70, %s71
      %p75 = pneg %p69
      %p76 = scmp.eq.s32.totalorder %s20, 1
      %p77 = por %p75, %p76
      %p78 = scmp.ne.s32.totalorder %s70, %s73
      %p79 = scmp.eq.s32.totalorder %s20, 0
      %p80 = por %p78, %p79
      %p81 = scmp.ne.s32.totalorder %s70, %s73
      %p82 = scmp.eq.s32.totalorder %s25, 1
      %p83 = por %p81, %p82
      %p84 = scmp.ne.s32.totalorder %s73, %s74
      %p85 = scmp.eq.s32.totalorder %s25, 0
      %p86 = por %p84, %p85
      %p87 = scmp.ne.s32.totalorder %s73, %s74
      %p88 = scmp.eq.s32.totalorder %s26, 1
      %p89 = por %p87, %p88
      %p91 = scmp.ne.s32.totalorder %s74, %s90
      %p92 = scmp.eq.s32.totalorder %s26, 0
      %p93 = por %p91, %p92
      %s95 = sadd.s32 %s94, 1
      %p98 = scmp.eq.s32.totalorder %s20, 1
      %p99 = scmp.ne.s32.totalorder %s94, %s96
      %p100 = scmp.eq.s32.totalorder %s20, 0
      %p101 = por %p99, %p100
      %p102 = scmp.ne.s32.totalorder %s94, %s96
      %p103 = scmp.eq.s32.totalorder %s25, 1
      %p104 = por %p102, %p103
      %p105 = scmp.ne.s32.totalorder %s96, %s97
      %p106 = scmp.eq.s32.totalorder %s25, 0
      %p107 = por %p105, %p106
      %p108 = scmp.ne.s32.totalorder %s96, %s97
      %p109 = scmp.eq.s32.totalorder %s26, 1
      %p110 = por %p108, %p109
      %p112 = scmp.ne.s32.totalorder %s97, %s111
      %p113 = scmp.eq.s32.totalorder %s26, 0
      %p114 = por %p112, %p113
      %s116 = sadd.s32 %s115, 1
      %p119 = scmp.eq.s32.totalorder %s20, 1
      %p120 = scmp.ne.s32.totalorder %s115, %s117
      %p121 = scmp.eq.s32.totalorder %s20, 0
      %p122 = por %p120, %p121
      %p123 = scmp.ne.s32.totalorder %s115, %s117
      %p124 = scmp.eq.s32.totalorder %s25, 1
      %p125 = por %p123, %p124
      %p126 = scmp.ne.s32.totalorder %s117, %s118
      %p127 = scmp.eq.s32.totalorder %s25, 0
      %p128 = por %p126, %p127
      %p129 = scmp.ne.s32.totalorder %s117, %s118
      %p130 = scmp.eq.s32.totalorder %s26, 1
      %p131 = por %p129, %p130
      %p133 = scmp.ne.s32.totalorder %s118, %s132
      %p134 = scmp.eq.s32.totalorder %s26, 0
      %p135 = por %p133, %p134
      %s137 = sadd.s32 %s136, 1
      %p140 = scmp.eq.s32.totalorder %s20, 1
      %p141 = scmp.ne.s32.totalorder %s136, %s138
      %p142 = scmp.eq.s32.totalorder %s20, 0
      %p143 = por %p141, %p142
      %p144 = scmp.ne.s32.totalorder %s136, %s138
      %p145 = scmp.eq.s32.totalorder %s25, 1
      %p146 = por %p144, %p145
      %p147 = scmp.ne.s32.totalorder %s138, %s139
      %p148 = scmp.eq.s32.totalorder %s25, 0
      %p149 = por %p147, %p148
      %p150 = scmp.ne.s32.totalorder %s138, %s139
      %p151 = scmp.eq.s32.totalorder %s26, 1
      %p152 = por %p150, %p151
      %p154 = scmp.ne.s32.totalorder %s139, %s153
      %p155 = scmp.eq.s32.totalorder %s26, 0
      %p156 = por %p154, %p155
      %s158 = sadd.s32 %s157, 1
      %p161 = scmp.eq.s32.totalorder %s20, 1
      %p162 = scmp.ne.s32.totalorder %s157, %s159
      %p163 = scmp.eq.s32.totalorder %s20, 0
      %p164 = por %p162, %p163
      %p165 = scmp.ne.s32.totalorder %s157, %s159
      %p166 = scmp.eq.s32.totalorder %s25, 1
      %p167 = por %p165, %p166
      %p168 = scmp.ne.s32.totalorder %s159, %s160
      %p169 = scmp.eq.s32.totalorder %s25, 0
      %p170 = por %p168, %p169
      %p171 = scmp.ne.s32.totalorder %s159, %s160
      %p172 = scmp.eq.s32.totalorder %s26, 1
      %p173 = por %p171, %p172
      %p175 = scmp.ne.s32.totalorder %s160, %s174
      %p176 = scmp.eq.s32.totalorder %s26, 0
      %p177 = por %p175, %p176
      %s178 = ssub.s32 %s27, %s39
      %p179 = scmp.eq.s32.totalorder %s178, 0
      %s181 = sadd.s32 %s180, 1
      %s182 = scalar_select %p179, %s180, %s181
      %p185 = pneg %p179
      %p186 = scmp.eq.s32.totalorder %s20, 1
      %p187 = por %p185, %p186
      %p188 = scmp.ne.s32.totalorder %s180, %s183
      %p189 = scmp.eq.s32.totalorder %s20, 0
      %p190 = por %p188, %p189
      %p191 = scmp.ne.s32.totalorder %s180, %s183
      %p192 = scmp.eq.s32.totalorder %s25, 1
      %p193 = por %p191, %p192
      %p194 = scmp.ne.s32.totalorder %s183, %s184
      %p195 = scmp.eq.s32.totalorder %s25, 0
      %p196 = por %p194, %p195
      %p197 = scmp.ne.s32.totalorder %s183, %s184
      %p198 = scmp.eq.s32.totalorder %s26, 1
      %p199 = por %p197, %p198
      %p201 = scmp.ne.s32.totalorder %s184, %s200
      %p202 = scmp.eq.s32.totalorder %s26, 0
      %p203 = por %p201, %p202
      %p204 = scmp.le.s32.totalorder 1, %s20
      %p205 = scmp.lt.s32.totalorder %s20, 3
      %p206 = pnand %p204, %p205
      %p207 = pneg %p206
      // Predicated region
      $region9: #{tpu_custom_call.1} parent=5 // pred_check
        _
      $region10: #{tpu_custom_call.1} parent=5 // pred_check_branch
        %209 = sbr.rel (%p206) target = $region12
      $region11: #{tpu_custom_call.1} parent=5 // pred_region
        %s210 = ssub.s32 %s20, 1
        // Predicated region
        $region13: #{tpu_custom_call.1} parent=11 // pred_check
          %p211 = pneg %p107
        $region14: #{tpu_custom_call.1} parent=11 // pred_check_branch
          %213 = sbr.rel (%p211) target = $region16
        $region15: #{tpu_custom_call.1} parent=11 // pred_region
          _
        $region16: #{tpu_custom_call.1} parent=11 // pred_fallthru
          _
        // Predicated region
        $region17: #{tpu_custom_call.1} parent=11 // pred_check
          %p214 = pneg %p128
        $region18: #{tpu_custom_call.1} parent=11 // pred_check_branch
          %216 = sbr.rel (%p214) target = $region20
        $region19: #{tpu_custom_call.1} parent=11 // pred_region
          %s218 = ssub.s32 8192, 8192
          %219 = vsyncadd [#allocation7], %s218
          %s220 = sshll.u32 [#allocation8], 4
          %s221 = int_to_ptr.vmem [resolvable:$true] %s220
          %226 = dma.hbm_to_vmem [thread:$0]  %s3, 8192, %s221, [#allocation7], 128, 128, 8
        $region20: #{tpu_custom_call.1} parent=11 // pred_fallthru
          _
        // Predicated region
        $region21: #{tpu_custom_call.1} parent=11 // pred_check
          %p227 = pneg %p149
        $region22: #{tpu_custom_call.1} parent=11 // pred_check_branch
          %229 = sbr.rel (%p227) target = $region24
        $region23: #{tpu_custom_call.1} parent=11 // pred_region
          _
        $region24: #{tpu_custom_call.1} parent=11 // pred_fallthru
          _
        // Predicated region
        $region25: #{tpu_custom_call.1} parent=11 // pred_check
          %p230 = pneg %p170
        $region26: #{tpu_custom_call.1} parent=11 // pred_check_branch
          %232 = sbr.rel (%p230) target = $region28
        $region27: #{tpu_custom_call.1} parent=11 // pred_region
          %s234 = ssub.s32 2048, 2048
          %235 = vsyncadd [#allocation10], %s234
          %s236 = sshll.u32 [#allocation9], 4
          %s237 = int_to_ptr.vmem [resolvable:$true] %s236
          %242 = dma.hbm_to_vmem [thread:$0]  %s5, 2048, %s237, [#allocation10], 64, 64, 4
        $region28: #{tpu_custom_call.1} parent=11 // pred_fallthru
          _
      $region12: #{tpu_custom_call.1} parent=5 // pred_fallthru
        _
      %p243 = scmp.lt.s32.totalorder %s20, 2
      // Predicated region
      $region29: #{tpu_custom_call.1} parent=5 // pred_check
        %p244 = pneg %p243
      $region30: #{tpu_custom_call.1} parent=5 // pred_check_branch
        %246 = sbr.rel (%p244) target = $region32
      $region31: #{tpu_custom_call.1} parent=5 // pred_region
        // Predicated region
        $region33: #{tpu_custom_call.1} parent=31 // pred_check
          %p247 = pneg %p54
        $region34: #{tpu_custom_call.1} parent=31 // pred_check_branch
          %249 = sbr.rel (%p247) target = $region36
        $region35: #{tpu_custom_call.1} parent=31 // pred_region
          %s250 = sand.u32 %s44, 1
          %s251 = scalar_lea.sflag [#allocation4], %s250
          %s252 = sand.u32 %s44, 1
          %s253 = smul.addr %s252, 32
          %s254 = scalar_lea.vmem [#allocation3], %s253
          %s255 = smul.u32 4, %s28
          %s257 = ssub.s32 512, 512
          %258 = vsyncadd %s251, %s257
          %s259 = smul.addr %s27, 8
          %s260 = sadd.s32 %s255, %s259
          %s261 = smul.addr %s260, 128
          %s262 = scalar_lea.hbm %s0, %s261
          %s264 = sshll.u32 %s254, 4
          %s265 = int_to_ptr.vmem [resolvable:$true] %s264
          %267 = dma.hbm_to_vmem [thread:$0]  %s262, 512, %s265, %s251
        $region36: #{tpu_custom_call.1} parent=31 // pred_fallthru
          _
        // Predicated region
        $region37: #{tpu_custom_call.1} parent=31 // pred_check
          %p268 = pneg %p80
        $region38: #{tpu_custom_call.1} parent=31 // pred_check_branch
          %270 = sbr.rel (%p268) target = $region40
        $region39: #{tpu_custom_call.1} parent=31 // pred_region
          %s271 = sand.u32 %s20, 1
          %s272 = scalar_lea.sflag [#allocation7], %s271
          %s273 = sand.u32 %s70, 1
          %s274 = smul.addr %s273, 1024
          %s275 = scalar_lea.vmem [#allocation6], %s274
          %s276 = smul.u32 64, %s28
          %s278 = ssub.s32 16384, 16384
          %279 = vsyncadd %s272, %s278
          %s280 = smul.addr %s276, 4
          %s281 = smul.addr %s280, 64
          %s282 = scalar_lea.hbm %s1, %s281
          %s283 = sshll.u32 %s275, 4
          %s284 = int_to_ptr.vmem [resolvable:$true] %s283
          %289 = dma.hbm_to_vmem [thread:$0]  %s282, 16384, %s284, %s272, 256, 256, 16
        $region40: #{tpu_custom_call.1} parent=31 // pred_fallthru
          _
      $region32: #{tpu_custom_call.1} parent=5 // pred_fallthru
        _
      %p290 = scmp.le.s32.totalorder 1, %s20
      %p291 = scmp.lt.s32.totalorder %s20, 3
      %p292 = pnand %p290, %p291
      %p293 = pneg %p292
      // Predicated region
      $region41: #{tpu_custom_call.1} parent=5 // pred_check
        _
      $region42: #{tpu_custom_call.1} parent=5 // pred_check_branch
        %295 = sbr.rel (%p292) target = $region44
      $region43: #{tpu_custom_call.1} parent=5 // pred_region
        %s296 = ssub.s32 %s20, 1
        %s297 = sand.u32 %s47, 1
        %s298 = scalar_lea.sflag [#allocation4], %s297
        %s299 = sand.u32 %s47, 1
        %s300 = smul.addr %s299, 32
        %s301 = scalar_lea.vmem [#allocation3], %s300
        // Predicated region
        $region45: #{tpu_custom_call.1} parent=43 // pred_check
          %p302 = pneg %p60
        $region46: #{tpu_custom_call.1} parent=43 // pred_check_branch
          %304 = sbr.rel (%p302) target = $region48
        $region47: #{tpu_custom_call.1} parent=43 // pred_region
          %305 = dma.done %s298, 512
        $region48: #{tpu_custom_call.1} parent=43 // pred_fallthru
          _
        %s306 = sand.u32 %s25, 1
        %s307 = scalar_lea.sflag [#allocation7], %s306
        %s308 = sand.u32 %s73, 1
        %s309 = smul.addr %s308, 1024
        %s310 = scalar_lea.vmem [#allocation6], %s309
        // Predicated region
        $region49: #{tpu_custom_call.1} parent=43 // pred_check
          %p311 = pneg %p86
        $region50: #{tpu_custom_call.1} parent=43 // pred_check_branch
          %313 = sbr.rel (%p311) target = $region52
        $region51: #{tpu_custom_call.1} parent=43 // pred_region
          %314 = dma.done %s307, 16384
        $region52: #{tpu_custom_call.1} parent=43 // pred_fallthru
          _
        // Predicated region
        $region53: #{tpu_custom_call.1} parent=43 // pred_check
          %p315 = pneg %p128
        $region54: #{tpu_custom_call.1} parent=43 // pred_check_branch
          %317 = sbr.rel (%p315) target = $region56
        $region55: #{tpu_custom_call.1} parent=43 // pred_region
          %318 = dma.done [#allocation7], 8192
        $region56: #{tpu_custom_call.1} parent=43 // pred_fallthru
          _
        // Predicated region
        $region57: #{tpu_custom_call.1} parent=43 // pred_check
          %p319 = pneg %p170
        $region58: #{tpu_custom_call.1} parent=43 // pred_check_branch
          %321 = sbr.rel (%p319) target = $region60
        $region59: #{tpu_custom_call.1} parent=43 // pred_region
          %322 = dma.done [#allocation10], 2048
        $region60: #{tpu_custom_call.1} parent=43 // pred_fallthru
          _
        %s323 = sand.u32 %s47, 1
        %s324 = scalar_lea.sflag [#allocation4], %s323
        %s325 = sand.u32 %s47, 1
        %s326 = smul.addr %s325, 32
        %s327 = scalar_lea.vmem [#allocation3], %s326
        %p328 = pneg %p60
        %p329 = pneg %p57
        %s330 = sand.u32 %s25, 1
        %s331 = scalar_lea.sflag [#allocation7], %s330
        %s332 = sand.u32 %s73, 1
        %s333 = smul.addr %s332, 1024
        %s334 = scalar_lea.vmem [#allocation6], %s333
        %p335 = pneg %p86
        %p336 = pneg %p83
        %p337 = pneg %p107
        %p338 = pneg %p104
        %p339 = pneg %p128
        %p340 = pneg %p125
        %p341 = pneg %p149
        %p342 = pneg %p146
        %p343 = pneg %p170
        %p344 = pneg %p167
        %p345 = pneg %p196
        %p346 = pneg %p193
        %s347 = smul.u32 4, %s30
        %s348 = smul.u32 64, %s30
        %p350 = scmp.eq.s32.totalorder %s30, 0
        // Predicated region
        $region61: #{tpu_custom_call.1} parent=43 // pred_check
          %p351 = pneg %p350
        $region62: #{tpu_custom_call.1} parent=43 // pred_check_branch
          %353 = sbr.rel (%p351) target = $region64
        $region63: #{tpu_custom_call.1} parent=43 // pred_region
          %v354 = vld [vmem:[%s2] sm:$0xf]
          %v356 = vlaneseq
          %v357 = vshrl.u32 %v356, 7
          %v358 = vsub.s32 0, %v357
          %v359 = vrot.slane %v354, %v358
          %v360 = vlaneseq
          %v361 = vshrl.u32 %v360, 7
          %v362 = vsub.s32 1, %v361
          %v363 = vrot.slane %v354, %v362
          %v364 = vlaneseq
          %v365 = vshrl.u32 %v364, 7
          %v366 = vsub.s32 2, %v365
          %v367 = vrot.slane %v354, %v366
          %v368 = vlaneseq
          %v369 = vshrl.u32 %v368, 7
          %v370 = vsub.s32 3, %v369
          %v371 = vrot.slane %v354, %v370
          %376 = vst [vmem:[#allocation2] sm:$0xff] %v359
          %377 = vst [vmem:[#allocation2 + $0x8] sm:$0xff] %v363
          %378 = vst [vmem:[#allocation2 + $0x10] sm:$0xff] %v367
          %379 = vst [vmem:[#allocation2 + $0x18] sm:$0xff] %v371
        $region64: #{tpu_custom_call.1} parent=43 // pred_fallthru
          _
        %v380 = vld [vmem:[#allocation2] sm:$0xff]
        %v381 = vld [vmem:[#allocation2 + $0x8] sm:$0xff]
        %v382 = vld [vmem:[#allocation2 + $0x10] sm:$0xff]
        %v383 = vld [vmem:[#allocation2 + $0x18] sm:$0xff]
        %v384 = vld [vmem:[%s301] sm:$0xff]
        %v385 = vld [vmem:[%s301 + $0x8] sm:$0xff]
        %v386 = vld [vmem:[%s301 + $0x10] sm:$0xff]
        %v387 = vld [vmem:[%s301 + $0x18] sm:$0xff]
        %v388 = vpack.c.bf16 %v384, %v384
        %v389 = vpack.c.bf16 %v385, %v385
        %v390 = vpack.c.bf16 %v386, %v386
        %v391 = vpack.c.bf16 %v387, %v387
        %v392 = vld [vmem:[%s310] sm:$0xff]
        %v393 = vld [vmem:[%s310 + $0x8] sm:$0xff]
        %v394 = vld [vmem:[%s310 + $0x10] sm:$0xff]
        %v395 = vld [vmem:[%s310 + $0x18] sm:$0xff]
        %v396 = vld [vmem:[%s310 + $0x20] sm:$0xff]
        %v397 = vld [vmem:[%s310 + $0x28] sm:$0xff]
        %v398 = vld [vmem:[%s310 + $0x30] sm:$0xff]
        %v399 = vld [vmem:[%s310 + $0x38] sm:$0xff]
        %v400 = vld [vmem:[%s310 + $0x40] sm:$0xff]
        %v401 = vld [vmem:[%s310 + $0x48] sm:$0xff]
        %v402 = vld [vmem:[%s310 + $0x50] sm:$0xff]
        %v403 = vld [vmem:[%s310 + $0x58] sm:$0xff]
        %v404 = vld [vmem:[%s310 + $0x60] sm:$0xff]
        %v405 = vld [vmem:[%s310 + $0x68] sm:$0xff]
        %v406 = vld [vmem:[%s310 + $0x70] sm:$0xff]
        %v407 = vld [vmem:[%s310 + $0x78] sm:$0xff]
        %v408 = vld [vmem:[%s310 + $0x80] sm:$0xff]
        %v409 = vld [vmem:[%s310 + $0x88] sm:$0xff]
        %v410 = vld [vmem:[%s310 + $0x90] sm:$0xff]
        %v411 = vld [vmem:[%s310 + $0x98] sm:$0xff]
        %v412 = vld [vmem:[%s310 + $0xa0] sm:$0xff]
        %v413 = vld [vmem:[%s310 + $0xa8] sm:$0xff]
        %v414 = vld [vmem:[%s310 + $0xb0] sm:$0xff]
        %v415 = vld [vmem:[%s310 + $0xb8] sm:$0xff]
        %v416 = vld [vmem:[%s310 + $0xc0] sm:$0xff]
        %v417 = vld [vmem:[%s310 + $0xc8] sm:$0xff]
        %v418 = vld [vmem:[%s310 + $0xd0] sm:$0xff]
        %v419 = vld [vmem:[%s310 + $0xd8] sm:$0xff]
        %v420 = vld [vmem:[%s310 + $0xe0] sm:$0xff]
        %v421 = vld [vmem:[%s310 + $0xe8] sm:$0xff]
        %v422 = vld [vmem:[%s310 + $0xf0] sm:$0xff]
        %v423 = vld [vmem:[%s310 + $0xf8] sm:$0xff]
        %v424 = vld [vmem:[%s310 + $0x100] sm:$0xff]
        %v425 = vld [vmem:[%s310 + $0x108] sm:$0xff]
        %v426 = vld [vmem:[%s310 + $0x110] sm:$0xff]
        %v427 = vld [vmem:[%s310 + $0x118] sm:$0xff]
        %v428 = vld [vmem:[%s310 + $0x120] sm:$0xff]
        %v429 = vld [vmem:[%s310 + $0x128] sm:$0xff]
        %v430 = vld [vmem:[%s310 + $0x130] sm:$0xff]
        %v431 = vld [vmem:[%s310 + $0x138] sm:$0xff]
        %v432 = vld [vmem:[%s310 + $0x140] sm:$0xff]
        %v433 = vld [vmem:[%s310 + $0x148] sm:$0xff]
        %v434 = vld [vmem:[%s310 + $0x150] sm:$0xff]
        %v435 = vld [vmem:[%s310 + $0x158] sm:$0xff]
        %v436 = vld [vmem:[%s310 + $0x160] sm:$0xff]
        %v437 = vld [vmem:[%s310 + $0x168] sm:$0xff]
        %v438 = vld [vmem:[%s310 + $0x170] sm:$0xff]
        %v439 = vld [vmem:[%s310 + $0x178] sm:$0xff]
        %v440 = vld [vmem:[%s310 + $0x180] sm:$0xff]
        %v441 = vld [vmem:[%s310 + $0x188] sm:$0xff]
        %v442 = vld [vmem:[%s310 + $0x190] sm:$0xff]
        %v443 = vld [vmem:[%s310 + $0x198] sm:$0xff]
        %v444 = vld [vmem:[%s310 + $0x1a0] sm:$0xff]
        %v445 = vld [vmem:[%s310 + $0x1a8] sm:$0xff]
        %v446 = vld [vmem:[%s310 + $0x1b0] sm:$0xff]
        %v447 = vld [vmem:[%s310 + $0x1b8] sm:$0xff]
        %v448 = vld [vmem:[%s310 + $0x1c0] sm:$0xff]
        %v449 = vld [vmem:[%s310 + $0x1c8] sm:$0xff]
        %v450 = vld [vmem:[%s310 + $0x1d0] sm:$0xff]
        %v451 = vld [vmem:[%s310 + $0x1d8] sm:$0xff]
        %v452 = vld [vmem:[%s310 + $0x1e0] sm:$0xff]
        %v453 = vld [vmem:[%s310 + $0x1e8] sm:$0xff]
        %v454 = vld [vmem:[%s310 + $0x1f0] sm:$0xff]
        %v455 = vld [vmem:[%s310 + $0x1f8] sm:$0xff]
        %v456 = vld [vmem:[%s310 + $0x200] sm:$0xff]
        %v457 = vld [vmem:[%s310 + $0x208] sm:$0xff]
        %v458 = vld [vmem:[%s310 + $0x210] sm:$0xff]
        %v459 = vld [vmem:[%s310 + $0x218] sm:$0xff]
        %v460 = vld [vmem:[%s310 + $0x220] sm:$0xff]
        %v461 = vld [vmem:[%s310 + $0x228] sm:$0xff]
        %v462 = vld [vmem:[%s310 + $0x230] sm:$0xff]
        %v463 = vld [vmem:[%s310 + $0x238] sm:$0xff]
        %v464 = vld [vmem:[%s310 + $0x240] sm:$0xff]
        %v465 = vld [vmem:[%s310 + $0x248] sm:$0xff]
        %v466 = vld [vmem:[%s310 + $0x250] sm:$0xff]
        %v467 = vld [vmem:[%s310 + $0x258] sm:$0xff]
        %v468 = vld [vmem:[%s310 + $0x260] sm:$0xff]
        %v469 = vld [vmem:[%s310 + $0x268] sm:$0xff]
        %v470 = vld [vmem:[%s310 + $0x270] sm:$0xff]
        %v471 = vld [vmem:[%s310 + $0x278] sm:$0xff]
        %v472 = vld [vmem:[%s310 + $0x280] sm:$0xff]
        %v473 = vld [vmem:[%s310 + $0x288] sm:$0xff]
        %v474 = vld [vmem:[%s310 + $0x290] sm:$0xff]
        %v475 = vld [vmem:[%s310 + $0x298] sm:$0xff]
        %v476 = vld [vmem:[%s310 + $0x2a0] sm:$0xff]
        %v477 = vld [vmem:[%s310 + $0x2a8] sm:$0xff]
        %v478 = vld [vmem:[%s310 + $0x2b0] sm:$0xff]
        %v479 = vld [vmem:[%s310 + $0x2b8] sm:$0xff]
        %v480 = vld [vmem:[%s310 + $0x2c0] sm:$0xff]
        %v481 = vld [vmem:[%s310 + $0x2c8] sm:$0xff]
        %v482 = vld [vmem:[%s310 + $0x2d0] sm:$0xff]
        %v483 = vld [vmem:[%s310 + $0x2d8] sm:$0xff]
        %v484 = vld [vmem:[%s310 + $0x2e0] sm:$0xff]
        %v485 = vld [vmem:[%s310 + $0x2e8] sm:$0xff]
        %v486 = vld [vmem:[%s310 + $0x2f0] sm:$0xff]
        %v487 = vld [vmem:[%s310 + $0x2f8] sm:$0xff]
        %v488 = vld [vmem:[%s310 + $0x300] sm:$0xff]
        %v489 = vld [vmem:[%s310 + $0x308] sm:$0xff]
        %v490 = vld [vmem:[%s310 + $0x310] sm:$0xff]
        %v491 = vld [vmem:[%s310 + $0x318] sm:$0xff]
        %v492 = vld [vmem:[%s310 + $0x320] sm:$0xff]
        %v493 = vld [vmem:[%s310 + $0x328] sm:$0xff]
        %v494 = vld [vmem:[%s310 + $0x330] sm:$0xff]
        %v495 = vld [vmem:[%s310 + $0x338] sm:$0xff]
        %v496 = vld [vmem:[%s310 + $0x340] sm:$0xff]
        %v497 = vld [vmem:[%s310 + $0x348] sm:$0xff]
        %v498 = vld [vmem:[%s310 + $0x350] sm:$0xff]
        %v499 = vld [vmem:[%s310 + $0x358] sm:$0xff]
        %v500 = vld [vmem:[%s310 + $0x360] sm:$0xff]
        %v501 = vld [vmem:[%s310 + $0x368] sm:$0xff]
        %v502 = vld [vmem:[%s310 + $0x370] sm:$0xff]
        %v503 = vld [vmem:[%s310 + $0x378] sm:$0xff]
        %v504 = vld [vmem:[%s310 + $0x380] sm:$0xff]
        %v505 = vld [vmem:[%s310 + $0x388] sm:$0xff]
        %v506 = vld [vmem:[%s310 + $0x390] sm:$0xff]
        %v507 = vld [vmem:[%s310 + $0x398] sm:$0xff]
        %v508 = vld [vmem:[%s310 + $0x3a0] sm:$0xff]
        %v509 = vld [vmem:[%s310 + $0x3a8] sm:$0xff]
        %v510 = vld [vmem:[%s310 + $0x3b0] sm:$0xff]
        %v511 = vld [vmem:[%s310 + $0x3b8] sm:$0xff]
        %v512 = vld [vmem:[%s310 + $0x3c0] sm:$0xff]
        %v513 = vld [vmem:[%s310 + $0x3c8] sm:$0xff]
        %v514 = vld [vmem:[%s310 + $0x3d0] sm:$0xff]
        %v515 = vld [vmem:[%s310 + $0x3d8] sm:$0xff]
        %v516 = vld [vmem:[%s310 + $0x3e0] sm:$0xff]
        %v517 = vld [vmem:[%s310 + $0x3e8] sm:$0xff]
        %v518 = vld [vmem:[%s310 + $0x3f0] sm:$0xff]
        %v519 = vld [vmem:[%s310 + $0x3f8] sm:$0xff]
        %v648 = vunpack.c.l.b16 %v392
        %v649 = vunpack.c.h.b16 %v392
        %v650 = vunpack.c.l.b16 %v393
        %v651 = vunpack.c.h.b16 %v393
        %v652 = vunpack.c.l.b16 %v394
        %v653 = vunpack.c.h.b16 %v394
        %v654 = vunpack.c.l.b16 %v395
        %v655 = vunpack.c.h.b16 %v395
        %v656 = vunpack.c.l.b16 %v396
        %v657 = vunpack.c.h.b16 %v396
        %v658 = vunpack.c.l.b16 %v397
        %v659 = vunpack.c.h.b16 %v397
        %v660 = vunpack.c.l.b16 %v398
        %v661 = vunpack.c.h.b16 %v398
        %v662 = vunpack.c.l.b16 %v399
        %v663 = vunpack.c.h.b16 %v399
        %v664 = vunpack.c.l.b16 %v400
        %v665 = vunpack.c.h.b16 %v400
        %v666 = vunpack.c.l.b16 %v401
        %v667 = vunpack.c.h.b16 %v401
        %v668 = vunpack.c.l.b16 %v402
        %v669 = vunpack.c.h.b16 %v402
        %v670 = vunpack.c.l.b16 %v403
        %v671 = vunpack.c.h.b16 %v403
        %v672 = vunpack.c.l.b16 %v404
        %v673 = vunpack.c.h.b16 %v404
        %v674 = vunpack.c.l.b16 %v405
        %v675 = vunpack.c.h.b16 %v405
        %v676 = vunpack.c.l.b16 %v406
        %v677 = vunpack.c.h.b16 %v406
        %v678 = vunpack.c.l.b16 %v407
        %v679 = vunpack.c.h.b16 %v407
        %v680 = vunpack.c.l.b16 %v408
        %v681 = vunpack.c.h.b16 %v408
        %v682 = vunpack.c.l.b16 %v409
        %v683 = vunpack.c.h.b16 %v409
        %v684 = vunpack.c.l.b16 %v410
        %v685 = vunpack.c.h.b16 %v410
        %v686 = vunpack.c.l.b16 %v411
        %v687 = vunpack.c.h.b16 %v411
        %v688 = vunpack.c.l.b16 %v412
        %v689 = vunpack.c.h.b16 %v412
        %v690 = vunpack.c.l.b16 %v413
        %v691 = vunpack.c.h.b16 %v413
        %v692 = vunpack.c.l.b16 %v414
        %v693 = vunpack.c.h.b16 %v414
        %v694 = vunpack.c.l.b16 %v415
        %v695 = vunpack.c.h.b16 %v415
        %v696 = vunpack.c.l.b16 %v416
        %v697 = vunpack.c.h.b16 %v416
        %v698 = vunpack.c.l.b16 %v417
        %v699 = vunpack.c.h.b16 %v417
        %v700 = vunpack.c.l.b16 %v418
        %v701 = vunpack.c.h.b16 %v418
        %v702 = vunpack.c.l.b16 %v419
        %v703 = vunpack.c.h.b16 %v419
        %v704 = vunpack.c.l.b16 %v420
        %v705 = vunpack.c.h.b16 %v420
        %v706 = vunpack.c.l.b16 %v421
        %v707 = vunpack.c.h.b16 %v421
        %v708 = vunpack.c.l.b16 %v422
        %v709 = vunpack.c.h.b16 %v422
        %v710 = vunpack.c.l.b16 %v423
        %v711 = vunpack.c.h.b16 %v423
        %v712 = vunpack.c.l.b16 %v424
        %v713 = vunpack.c.h.b16 %v424
        %v714 = vunpack.c.l.b16 %v425
        %v715 = vunpack.c.h.b16 %v425
        %v716 = vunpack.c.l.b16 %v426
        %v717 = vunpack.c.h.b16 %v426
        %v718 = vunpack.c.l.b16 %v427
        %v719 = vunpack.c.h.b16 %v427
        %v720 = vunpack.c.l.b16 %v428
        %v721 = vunpack.c.h.b16 %v428
        %v722 = vunpack.c.l.b16 %v429
        %v723 = vunpack.c.h.b16 %v429
        %v724 = vunpack.c.l.b16 %v430
        %v725 = vunpack.c.h.b16 %v430
        %v726 = vunpack.c.l.b16 %v431
        %v727 = vunpack.c.h.b16 %v431
        %v728 = vunpack.c.l.b16 %v432
        %v729 = vunpack.c.h.b16 %v432
        %v730 = vunpack.c.l.b16 %v433
        %v731 = vunpack.c.h.b16 %v433
        %v732 = vunpack.c.l.b16 %v434
        %v733 = vunpack.c.h.b16 %v434
        %v734 = vunpack.c.l.b16 %v435
        %v735 = vunpack.c.h.b16 %v435
        %v736 = vunpack.c.l.b16 %v436
        %v737 = vunpack.c.h.b16 %v436
        %v738 = vunpack.c.l.b16 %v437
        %v739 = vunpack.c.h.b16 %v437
        %v740 = vunpack.c.l.b16 %v438
        %v741 = vunpack.c.h.b16 %v438
        %v742 = vunpack.c.l.b16 %v439
        %v743 = vunpack.c.h.b16 %v439
        %v744 = vunpack.c.l.b16 %v440
        %v745 = vunpack.c.h.b16 %v440
        %v746 = vunpack.c.l.b16 %v441
        %v747 = vunpack.c.h.b16 %v441
        %v748 = vunpack.c.l.b16 %v442
        %v749 = vunpack.c.h.b16 %v442
        %v750 = vunpack.c.l.b16 %v443
        %v751 = vunpack.c.h.b16 %v443
        %v752 = vunpack.c.l.b16 %v444
        %v753 = vunpack.c.h.b16 %v444
        %v754 = vunpack.c.l.b16 %v445
        %v755 = vunpack.c.h.b16 %v445
        %v756 = vunpack.c.l.b16 %v446
        %v757 = vunpack.c.h.b16 %v446
        %v758 = vunpack.c.l.b16 %v447
        %v759 = vunpack.c.h.b16 %v447
        %v760 = vunpack.c.l.b16 %v448
        %v761 = vunpack.c.h.b16 %v448
        %v762 = vunpack.c.l.b16 %v449
        %v763 = vunpack.c.h.b16 %v449
        %v764 = vunpack.c.l.b16 %v450
        %v765 = vunpack.c.h.b16 %v450
        %v766 = vunpack.c.l.b16 %v451
        %v767 = vunpack.c.h.b16 %v451
        %v768 = vunpack.c.l.b16 %v452
        %v769 = vunpack.c.h.b16 %v452
        %v770 = vunpack.c.l.b16 %v453
        %v771 = vunpack.c.h.b16 %v453
        %v772 = vunpack.c.l.b16 %v454
        %v773 = vunpack.c.h.b16 %v454
        %v774 = vunpack.c.l.b16 %v455
        %v775 = vunpack.c.h.b16 %v455
        %v776 = vunpack.c.l.b16 %v456
        %v777 = vunpack.c.h.b16 %v456
        %v778 = vunpack.c.l.b16 %v457
        %v779 = vunpack.c.h.b16 %v457
        %v780 = vunpack.c.l.b16 %v458
        %v781 = vunpack.c.h.b16 %v458
        %v782 = vunpack.c.l.b16 %v459
        %v783 = vunpack.c.h.b16 %v459
        %v784 = vunpack.c.l.b16 %v460
        %v785 = vunpack.c.h.b16 %v460
        %v786 = vunpack.c.l.b16 %v461
        %v787 = vunpack.c.h.b16 %v461
        %v788 = vunpack.c.l.b16 %v462
        %v789 = vunpack.c.h.b16 %v462
        %v790 = vunpack.c.l.b16 %v463
        %v791 = vunpack.c.h.b16 %v463
        %v792 = vunpack.c.l.b16 %v464
        %v793 = vunpack.c.h.b16 %v464
        %v794 = vunpack.c.l.b16 %v465
        %v795 = vunpack.c.h.b16 %v465
        %v796 = vunpack.c.l.b16 %v466
        %v797 = vunpack.c.h.b16 %v466
        %v798 = vunpack.c.l.b16 %v467
        %v799 = vunpack.c.h.b16 %v467
        %v800 = vunpack.c.l.b16 %v468
        %v801 = vunpack.c.h.b16 %v468
        %v802 = vunpack.c.l.b16 %v469
        %v803 = vunpack.c.h.b16 %v469
        %v804 = vunpack.c.l.b16 %v470
        %v805 = vunpack.c.h.b16 %v470
        %v806 = vunpack.c.l.b16 %v471
        %v807 = vunpack.c.h.b16 %v471
        %v808 = vunpack.c.l.b16 %v472
        %v809 = vunpack.c.h.b16 %v472
        %v810 = vunpack.c.l.b16 %v473
        %v811 = vunpack.c.h.b16 %v473
        %v812 = vunpack.c.l.b16 %v474
        %v813 = vunpack.c.h.b16 %v474
        %v814 = vunpack.c.l.b16 %v475
        %v815 = vunpack.c.h.b16 %v475
        %v816 = vunpack.c.l.b16 %v476
        %v817 = vunpack.c.h.b16 %v476
        %v818 = vunpack.c.l.b16 %v477
        %v819 = vunpack.c.h.b16 %v477
        %v820 = vunpack.c.l.b16 %v478
        %v821 = vunpack.c.h.b16 %v478
        %v822 = vunpack.c.l.b16 %v479
        %v823 = vunpack.c.h.b16 %v479
        %v824 = vunpack.c.l.b16 %v480
        %v825 = vunpack.c.h.b16 %v480
        %v826 = vunpack.c.l.b16 %v481
        %v827 = vunpack.c.h.b16 %v481
        %v828 = vunpack.c.l.b16 %v482
        %v829 = vunpack.c.h.b16 %v482
        %v830 = vunpack.c.l.b16 %v483
        %v831 = vunpack.c.h.b16 %v483
        %v832 = vunpack.c.l.b16 %v484
        %v833 = vunpack.c.h.b16 %v484
        %v834 = vunpack.c.l.b16 %v485
        %v835 = vunpack.c.h.b16 %v485
        %v836 = vunpack.c.l.b16 %v486
        %v837 = vunpack.c.h.b16 %v486
        %v838 = vunpack.c.l.b16 %v487
        %v839 = vunpack.c.h.b16 %v487
        %v840 = vunpack.c.l.b16 %v488
        %v841 = vunpack.c.h.b16 %v488
        %v842 = vunpack.c.l.b16 %v489
        %v843 = vunpack.c.h.b16 %v489
        %v844 = vunpack.c.l.b16 %v490
        %v845 = vunpack.c.h.b16 %v490
        %v846 = vunpack.c.l.b16 %v491
        %v847 = vunpack.c.h.b16 %v491
        %v848 = vunpack.c.l.b16 %v492
        %v849 = vunpack.c.h.b16 %v492
        %v850 = vunpack.c.l.b16 %v493
        %v851 = vunpack.c.h.b16 %v493
        %v852 = vunpack.c.l.b16 %v494
        %v853 = vunpack.c.h.b16 %v494
        %v854 = vunpack.c.l.b16 %v495
        %v855 = vunpack.c.h.b16 %v495
        %v856 = vunpack.c.l.b16 %v496
        %v857 = vunpack.c.h.b16 %v496
        %v858 = vunpack.c.l.b16 %v497
        %v859 = vunpack.c.h.b16 %v497
        %v860 = vunpack.c.l.b16 %v498
        %v861 = vunpack.c.h.b16 %v498
        %v862 = vunpack.c.l.b16 %v499
        %v863 = vunpack.c.h.b16 %v499
        %v864 = vunpack.c.l.b16 %v500
        %v865 = vunpack.c.h.b16 %v500
        %v866 = vunpack.c.l.b16 %v501
        %v867 = vunpack.c.h.b16 %v501
        %v868 = vunpack.c.l.b16 %v502
        %v869 = vunpack.c.h.b16 %v502
        %v870 = vunpack.c.l.b16 %v503
        %v871 = vunpack.c.h.b16 %v503
        %v872 = vunpack.c.l.b16 %v504
        %v873 = vunpack.c.h.b16 %v504
        %v874 = vunpack.c.l.b16 %v505
        %v875 = vunpack.c.h.b16 %v505
        %v876 = vunpack.c.l.b16 %v506
        %v877 = vunpack.c.h.b16 %v506
        %v878 = vunpack.c.l.b16 %v507
        %v879 = vunpack.c.h.b16 %v507
        %v880 = vunpack.c.l.b16 %v508
        %v881 = vunpack.c.h.b16 %v508
        %v882 = vunpack.c.l.b16 %v509
        %v883 = vunpack.c.h.b16 %v509
        %v884 = vunpack.c.l.b16 %v510
        %v885 = vunpack.c.h.b16 %v510
        %v886 = vunpack.c.l.b16 %v511
        %v887 = vunpack.c.h.b16 %v511
        %v888 = vunpack.c.l.b16 %v512
        %v889 = vunpack.c.h.b16 %v512
        %v890 = vunpack.c.l.b16 %v513
        %v891 = vunpack.c.h.b16 %v513
        %v892 = vunpack.c.l.b16 %v514
        %v893 = vunpack.c.h.b16 %v514
        %v894 = vunpack.c.l.b16 %v515
        %v895 = vunpack.c.h.b16 %v515
        %v896 = vunpack.c.l.b16 %v516
        %v897 = vunpack.c.h.b16 %v516
        %v898 = vunpack.c.l.b16 %v517
        %v899 = vunpack.c.h.b16 %v517
        %v900 = vunpack.c.l.b16 %v518
        %v901 = vunpack.c.h.b16 %v518
        %v902 = vunpack.c.l.b16 %v519
        %v903 = vunpack.c.h.b16 %v519
        %v904 = vpack.c.b16 %v652, %v648
        %v905 = vpack.c.b16 %v653, %v649
        %v906 = vpack.c.b16 %v654, %v650
        %v907 = vpack.c.b16 %v655, %v651
        %v908 = vpack.c.b16 %v660, %v656
        %v909 = vpack.c.b16 %v661, %v657
        %v910 = vpack.c.b16 %v662, %v658
        %v911 = vpack.c.b16 %v663, %v659
        %v912 = vpack.c.b16 %v668, %v664
        %v913 = vpack.c.b16 %v669, %v665
        %v914 = vpack.c.b16 %v670, %v666
        %v915 = vpack.c.b16 %v671, %v667
        %v916 = vpack.c.b16 %v676, %v672
        %v917 = vpack.c.b16 %v677, %v673
        %v918 = vpack.c.b16 %v678, %v674
        %v919 = vpack.c.b16 %v679, %v675
        %v920 = vpack.c.b16 %v684, %v680
        %v921 = vpack.c.b16 %v685, %v681
        %v922 = vpack.c.b16 %v686, %v682
        %v923 = vpack.c.b16 %v687, %v683
        %v924 = vpack.c.b16 %v692, %v688
        %v925 = vpack.c.b16 %v693, %v689
        %v926 = vpack.c.b16 %v694, %v690
        %v927 = vpack.c.b16 %v695, %v691
        %v928 = vpack.c.b16 %v700, %v696
        %v929 = vpack.c.b16 %v701, %v697
        %v930 = vpack.c.b16 %v702, %v698
        %v931 = vpack.c.b16 %v703, %v699
        %v932 = vpack.c.b16 %v708, %v704
        %v933 = vpack.c.b16 %v709, %v705
        %v934 = vpack.c.b16 %v710, %v706
        %v935 = vpack.c.b16 %v711, %v707
        %v936 = vpack.c.b16 %v716, %v712
        %v937 = vpack.c.b16 %v717, %v713
        %v938 = vpack.c.b16 %v718, %v714
        %v939 = vpack.c.b16 %v719, %v715
        %v940 = vpack.c.b16 %v724, %v720
        %v941 = vpack.c.b16 %v725, %v721
        %v942 = vpack.c.b16 %v726, %v722
        %v943 = vpack.c.b16 %v727, %v723
        %v944 = vpack.c.b16 %v732, %v728
        %v945 = vpack.c.b16 %v733, %v729
        %v946 = vpack.c.b16 %v734, %v730
        %v947 = vpack.c.b16 %v735, %v731
        %v948 = vpack.c.b16 %v740, %v736
        %v949 = vpack.c.b16 %v741, %v737
        %v950 = vpack.c.b16 %v742, %v738
        %v951 = vpack.c.b16 %v743, %v739
        %v952 = vpack.c.b16 %v748, %v744
        %v953 = vpack.c.b16 %v749, %v745
        %v954 = vpack.c.b16 %v750, %v746
        %v955 = vpack.c.b16 %v751, %v747
        %v956 = vpack.c.b16 %v756, %v752
        %v957 = vpack.c.b16 %v757, %v753
        %v958 = vpack.c.b16 %v758, %v754
        %v959 = vpack.c.b16 %v759, %v755
        %v960 = vpack.c.b16 %v764, %v760
        %v961 = vpack.c.b16 %v765, %v761
        %v962 = vpack.c.b16 %v766, %v762
        %v963 = vpack.c.b16 %v767, %v763
        %v964 = vpack.c.b16 %v772, %v768
        %v965 = vpack.c.b16 %v773, %v769
        %v966 = vpack.c.b16 %v774, %v770
        %v967 = vpack.c.b16 %v775, %v771
        %v968 = vpack.c.b16 %v780, %v776
        %v969 = vpack.c.b16 %v781, %v777
        %v970 = vpack.c.b16 %v782, %v778
        %v971 = vpack.c.b16 %v783, %v779
        %v972 = vpack.c.b16 %v788, %v784
        %v973 = vpack.c.b16 %v789, %v785
        %v974 = vpack.c.b16 %v790, %v786
        %v975 = vpack.c.b16 %v791, %v787
        %v976 = vpack.c.b16 %v796, %v792
        %v977 = vpack.c.b16 %v797, %v793
        %v978 = vpack.c.b16 %v798, %v794
        %v979 = vpack.c.b16 %v799, %v795
        %v980 = vpack.c.b16 %v804, %v800
        %v981 = vpack.c.b16 %v805, %v801
        %v982 = vpack.c.b16 %v806, %v802
        %v983 = vpack.c.b16 %v807, %v803
        %v984 = vpack.c.b16 %v812, %v808
        %v985 = vpack.c.b16 %v813, %v809
        %v986 = vpack.c.b16 %v814, %v810
        %v987 = vpack.c.b16 %v815, %v811
        %v988 = vpack.c.b16 %v820, %v816
        %v989 = vpack.c.b16 %v821, %v817
        %v990 = vpack.c.b16 %v822, %v818
        %v991 = vpack.c.b16 %v823, %v819
        %v992 = vpack.c.b16 %v828, %v824
        %v993 = vpack.c.b16 %v829, %v825
        %v994 = vpack.c.b16 %v830, %v826
        %v995 = vpack.c.b16 %v831, %v827
        %v996 = vpack.c.b16 %v836, %v832
        %v997 = vpack.c.b16 %v837, %v833
        %v998 = vpack.c.b16 %v838, %v834
        %v999 = vpack.c.b16 %v839, %v835
        %v1000 = vpack.c.b16 %v844, %v840
        %v1001 = vpack.c.b16 %v845, %v841
        %v1002 = vpack.c.b16 %v846, %v842
        %v1003 = vpack.c.b16 %v847, %v843
        %v1004 = vpack.c.b16 %v852, %v848
        %v1005 = vpack.c.b16 %v853, %v849
        %v1006 = vpack.c.b16 %v854, %v850
        %v1007 = vpack.c.b16 %v855, %v851
        %v1008 = vpack.c.b16 %v860, %v856
        %v1009 = vpack.c.b16 %v861, %v857
        %v1010 = vpack.c.b16 %v862, %v858
        %v1011 = vpack.c.b16 %v863, %v859
        %v1012 = vpack.c.b16 %v868, %v864
        %v1013 = vpack.c.b16 %v869, %v865
        %v1014 = vpack.c.b16 %v870, %v866
        %v1015 = vpack.c.b16 %v871, %v867
        %v1016 = vpack.c.b16 %v876, %v872
        %v1017 = vpack.c.b16 %v877, %v873
        %v1018 = vpack.c.b16 %v878, %v874
        %v1019 = vpack.c.b16 %v879, %v875
        %v1020 = vpack.c.b16 %v884, %v880
        %v1021 = vpack.c.b16 %v885, %v881
        %v1022 = vpack.c.b16 %v886, %v882
        %v1023 = vpack.c.b16 %v887, %v883
        %v1024 = vpack.c.b16 %v892, %v888
        %v1025 = vpack.c.b16 %v893, %v889
        %v1026 = vpack.c.b16 %v894, %v890
        %v1027 = vpack.c.b16 %v895, %v891
        %v1028 = vpack.c.b16 %v900, %v896
        %v1029 = vpack.c.b16 %v901, %v897
        %v1030 = vpack.c.b16 %v902, %v898
        %v1031 = vpack.c.b16 %v903, %v899
        %1160 = vmatprep.subr.bf16.mxu0 %v905
        %1161 = vmatpush1.bf16.msra.mxu0 %v904
        %1162 = vmatprep.subr.bf16.mxu0 %v909
        %1163 = vmatpush1.bf16.msra.mxu0 %v908
        %1164 = vmatprep.subr.bf16.mxu0 %v913
        %1165 = vmatpush1.bf16.msra.mxu0 %v912
        %1166 = vmatprep.subr.bf16.mxu0 %v917
        %1167 = vmatpush1.bf16.msra.mxu0 %v916
        %1168 = vmatprep.subr.bf16.mxu0 %v921
        %1169 = vmatpush1.bf16.msra.mxu0 %v920
        %1170 = vmatprep.subr.bf16.mxu0 %v925
        %1171 = vmatpush1.bf16.msra.mxu0 %v924
        %1172 = vmatprep.subr.bf16.mxu0 %v929
        %1173 = vmatpush1.bf16.msra.mxu0 %v928
        %1174 = vmatprep.subr.bf16.mxu0 %v933
        %1175 = vmatpush1.bf16.msra.mxu0 %v932
        %1176 = vmatprep.subr.bf16.mxu0 %v937
        %1177 = vmatpush1.bf16.msra.mxu0 %v936
        %1178 = vmatprep.subr.bf16.mxu0 %v941
        %1179 = vmatpush1.bf16.msra.mxu0 %v940
        %1180 = vmatprep.subr.bf16.mxu0 %v945
        %1181 = vmatpush1.bf16.msra.mxu0 %v944
        %1182 = vmatprep.subr.bf16.mxu0 %v949
        %1183 = vmatpush1.bf16.msra.mxu0 %v948
        %1184 = vmatprep.subr.bf16.mxu0 %v953
        %1185 = vmatpush1.bf16.msra.mxu0 %v952
        %1186 = vmatprep.subr.bf16.mxu0 %v957
        %1187 = vmatpush1.bf16.msra.mxu0 %v956
        %1188 = vmatprep.subr.bf16.mxu0 %v961
        %1189 = vmatpush1.bf16.msra.mxu0 %v960
        %1190 = vmatprep.subr.bf16.mxu0 %v965
        %1191 = vmatpush1.bf16.msra.mxu0 %v964
        %1192 = vmatprep.mubr.bf16.mxu0 %v389
        %1193 = vmatmul.mubr.bf16.gmra.mrb[0].mxu0 %v388
        %v1194 = vpop.f32.mrb[0].mxu0
        %v1195 = vadd.f32 0.0, %v1194
        %v1196 = vpop.f32.mrb[0].mxu0
        %v1197 = vadd.f32 0.0, %v1196
        %v1198 = vpop.f32.mrb[0].mxu0
        %v1199 = vpop.f32.mrb[0].mxu0
        %1200 = vdwg.mxu0
        %1201 = vmatprep.subr.bf16.mxu0 %v969
        %1202 = vmatpush1.bf16.msra.mxu0 %v968
        %1203 = vmatprep.subr.bf16.mxu0 %v973
        %1204 = vmatpush1.bf16.msra.mxu0 %v972
        %1205 = vmatprep.subr.bf16.mxu0 %v977
        %1206 = vmatpush1.bf16.msra.mxu0 %v976
        %1207 = vmatprep.subr.bf16.mxu0 %v981
        %1208 = vmatpush1.bf16.msra.mxu0 %v980
        %1209 = vmatprep.subr.bf16.mxu0 %v985
        %1210 = vmatpush1.bf16.msra.mxu0 %v984
        %1211 = vmatprep.subr.bf16.mxu0 %v989
        %1212 = vmatpush1.bf16.msra.mxu0 %v988
        %1213 = vmatprep.subr.bf16.mxu0 %v993
        %1214 = vmatpush1.bf16.msra.mxu0 %v992
        %1215 = vmatprep.subr.bf16.mxu0 %v997
        %1216 = vmatpush1.bf16.msra.mxu0 %v996
        %1217 = vmatprep.subr.bf16.mxu0 %v1001
        %1218 = vmatpush1.bf16.msra.mxu0 %v1000
        %1219 = vmatprep.subr.bf16.mxu0 %v1005
        %1220 = vmatpush1.bf16.msra.mxu0 %v1004
        %1221 = vmatprep.subr.bf16.mxu0 %v1009
        %1222 = vmatpush1.bf16.msra.mxu0 %v1008
        %1223 = vmatprep.subr.bf16.mxu0 %v1013
        %1224 = vmatpush1.bf16.msra.mxu0 %v1012
        %1225 = vmatprep.subr.bf16.mxu0 %v1017
        %1226 = vmatpush1.bf16.msra.mxu0 %v1016
        %1227 = vmatprep.subr.bf16.mxu0 %v1021
        %1228 = vmatpush1.bf16.msra.mxu0 %v1020
        %1229 = vmatprep.subr.bf16.mxu0 %v1025
        %1230 = vmatpush1.bf16.msra.mxu0 %v1024
        %1231 = vmatprep.subr.bf16.mxu0 %v1029
        %1232 = vmatpush1.bf16.msra.mxu0 %v1028
        %1233 = vmatprep.mubr.bf16.mxu0 %v391
        %1234 = vmatmul.mubr.bf16.gmra.mrb[0].mxu0 %v390
        %v1235 = vpop.f32.mrb[0].mxu0
        %v1236 = vadd.f32 %v1195, %v1235
        %v1237 = vpop.f32.mrb[0].mxu0
        %v1238 = vadd.f32 %v1197, %v1237
        %v1239 = vpop.f32.mrb[0].mxu0
        %v1240 = vpop.f32.mrb[0].mxu0
        %1241 = vdwg.mxu0
        %1242 = vmatprep.subr.bf16.mxu0 %v907
        %1243 = vmatpush1.bf16.msra.mxu0 %v906
        %1244 = vmatprep.subr.bf16.mxu0 %v911
        %1245 = vmatpush1.bf16.msra.mxu0 %v910
        %1246 = vmatprep.subr.bf16.mxu0 %v915
        %1247 = vmatpush1.bf16.msra.mxu0 %v914
        %1248 = vmatprep.subr.bf16.mxu0 %v919
        %1249 = vmatpush1.bf16.msra.mxu0 %v918
        %1250 = vmatprep.subr.bf16.mxu0 %v923
        %1251 = vmatpush1.bf16.msra.mxu0 %v922
        %1252 = vmatprep.subr.bf16.mxu0 %v927
        %1253 = vmatpush1.bf16.msra.mxu0 %v926
        %1254 = vmatprep.subr.bf16.mxu0 %v931
        %1255 = vmatpush1.bf16.msra.mxu0 %v930
        %1256 = vmatprep.subr.bf16.mxu0 %v935
        %1257 = vmatpush1.bf16.msra.mxu0 %v934
        %1258 = vmatprep.subr.bf16.mxu0 %v939
        %1259 = vmatpush1.bf16.msra.mxu0 %v938
        %1260 = vmatprep.subr.bf16.mxu0 %v943
        %1261 = vmatpush1.bf16.msra.mxu0 %v942
        %1262 = vmatprep.subr.bf16.mxu0 %v947
        %1263 = vmatpush1.bf16.msra.mxu0 %v946
        %1264 = vmatprep.subr.bf16.mxu0 %v951
        %1265 = vmatpush1.bf16.msra.mxu0 %v950
        %1266 = vmatprep.subr.bf16.mxu0 %v955
        %1267 = vmatpush1.bf16.msra.mxu0 %v954
        %1268 = vmatprep.subr.bf16.mxu0 %v959
        %1269 = vmatpush1.bf16.msra.mxu0 %v958
        %1270 = vmatprep.subr.bf16.mxu0 %v963
        %1271 = vmatpush1.bf16.msra.mxu0 %v962
        %1272 = vmatprep.subr.bf16.mxu0 %v967
        %1273 = vmatpush1.bf16.msra.mxu0 %v966
        %1274 = vmatprep.mubr.bf16.mxu0 %v389
        %1275 = vmatmul.mubr.bf16.gmra.mrb[0].mxu0 %v388
        %v1276 = vpop.f32.mrb[0].mxu0
        %v1277 = vadd.f32 0.0, %v1276
        %v1278 = vpop.f32.mrb[0].mxu0
        %v1279 = vadd.f32 0.0, %v1278
        %v1280 = vpop.f32.mrb[0].mxu0
        %v1281 = vpop.f32.mrb[0].mxu0
        %1282 = vdwg.mxu0
        %1283 = vmatprep.subr.bf16.mxu0 %v971
        %1284 = vmatpush1.bf16.msra.mxu0 %v970
        %1285 = vmatprep.subr.bf16.mxu0 %v975
        %1286 = vmatpush1.bf16.msra.mxu0 %v974
        %1287 = vmatprep.subr.bf16.mxu0 %v979
        %1288 = vmatpush1.bf16.msra.mxu0 %v978
        %1289 = vmatprep.subr.bf16.mxu0 %v983
        %1290 = vmatpush1.bf16.msra.mxu0 %v982
        %1291 = vmatprep.subr.bf16.mxu0 %v987
        %1292 = vmatpush1.bf16.msra.mxu0 %v986
        %1293 = vmatprep.subr.bf16.mxu0 %v991
        %1294 = vmatpush1.bf16.msra.mxu0 %v990
        %1295 = vmatprep.subr.bf16.mxu0 %v995
        %1296 = vmatpush1.bf16.msra.mxu0 %v994
        %1297 = vmatprep.subr.bf16.mxu0 %v999
        %1298 = vmatpush1.bf16.msra.mxu0 %v998
        %1299 = vmatprep.subr.bf16.mxu0 %v1003
        %1300 = vmatpush1.bf16.msra.mxu0 %v1002
        %1301 = vmatprep.subr.bf16.mxu0 %v1007
        %1302 = vmatpush1.bf16.msra.mxu0 %v1006
        %1303 = vmatprep.subr.bf16.mxu0 %v1011
        %1304 = vmatpush1.bf16.msra.mxu0 %v1010
        %1305 = vmatprep.subr.bf16.mxu0 %v1015
        %1306 = vmatpush1.bf16.msra.mxu0 %v1014
        %1307 = vmatprep.subr.bf16.mxu0 %v1019
        %1308 = vmatpush1.bf16.msra.mxu0 %v1018
        %1309 = vmatprep.subr.bf16.mxu0 %v1023
        %1310 = vmatpush1.bf16.msra.mxu0 %v1022
        %1311 = vmatprep.subr.bf16.mxu0 %v1027
        %1312 = vmatpush1.bf16.msra.mxu0 %v1026
        %1313 = vmatprep.subr.bf16.mxu0 %v1031
        %1314 = vmatpush1.bf16.msra.mxu0 %v1030
        %1315 = vmatprep.mubr.bf16.mxu0 %v391
        %1316 = vmatmul.mubr.bf16.gmra.mrb[0].mxu0 %v390
        %v1317 = vpop.f32.mrb[0].mxu0
        %v1318 = vadd.f32 %v1277, %v1317
        %v1319 = vpop.f32.mrb[0].mxu0
        %v1320 = vadd.f32 %v1279, %v1319
        %v1321 = vpop.f32.mrb[0].mxu0
        %v1322 = vpop.f32.mrb[0].mxu0
        %1323 = vdwg.mxu0
        %v1324 = vadd.f32 %v380, %v1236
        %v1325 = vadd.f32 %v381, %v1238
        %v1326 = vadd.f32 %v382, %v1318
        %v1327 = vadd.f32 %v383, %v1320
        %1328 = vst [vmem:[#allocation2] sm:$0xff] %v1324
        %1329 = vst [vmem:[#allocation2 + $0x8] sm:$0xff] %v1325
        %1330 = vst [vmem:[#allocation2 + $0x10] sm:$0xff] %v1326
        %1331 = vst [vmem:[#allocation2 + $0x18] sm:$0xff] %v1327
        %p1332 = scmp.eq.s32.totalorder %s30, 1
        // Predicated region
        $region65: #{tpu_custom_call.1} parent=43 // pred_check
          %p1333 = pneg %p1332
        $region66: #{tpu_custom_call.1} parent=43 // pred_check_branch
          %1335 = sbr.rel (%p1333) target = $region68
        $region67: #{tpu_custom_call.1} parent=43 // pred_region
          %v1336 = vld [vmem:[#allocation2] sm:$0xff]
          %v1337 = vld [vmem:[#allocation2 + $0x8] sm:$0xff]
          %v1338 = vld [vmem:[#allocation2 + $0x10] sm:$0xff]
          %v1339 = vld [vmem:[#allocation2 + $0x18] sm:$0xff]
          %v1340 = vmul.f32 %v1336, 0.2
          %v1341 = vmul.f32 %v1337, 0.2
          %v1342 = vmul.f32 %v1338, 0.2
          %v1343 = vmul.f32 %v1339, 0.2
          %v1344 = vmax.f32 %v1336, %v1340
          %v1345 = vmax.f32 %v1337, %v1341
          %v1346 = vmax.f32 %v1338, %v1342
          %v1347 = vmax.f32 %v1339, %v1343
          %v1348 = vpack.c.bf16 %v1344, %v1344
          %v1349 = vpack.c.bf16 %v1345, %v1345
          %v1350 = vpack.c.bf16 %v1346, %v1346
          %v1351 = vpack.c.bf16 %v1347, %v1347
          %v1352 = vld [vmem:[#allocation8] sm:$0xff]
          %v1353 = vld [vmem:[#allocation8 + $0x8] sm:$0xff]
          %v1354 = vld [vmem:[#allocation8 + $0x10] sm:$0xff]
          %v1355 = vld [vmem:[#allocation8 + $0x18] sm:$0xff]
          %v1356 = vld [vmem:[#allocation8 + $0x20] sm:$0xff]
          %v1357 = vld [vmem:[#allocation8 + $0x28] sm:$0xff]
          %v1358 = vld [vmem:[#allocation8 + $0x30] sm:$0xff]
          %v1359 = vld [vmem:[#allocation8 + $0x38] sm:$0xff]
          %v1360 = vld [vmem:[#allocation8 + $0x40] sm:$0xff]
          %v1361 = vld [vmem:[#allocation8 + $0x48] sm:$0xff]
          %v1362 = vld [vmem:[#allocation8 + $0x50] sm:$0xff]
          %v1363 = vld [vmem:[#allocation8 + $0x58] sm:$0xff]
          %v1364 = vld [vmem:[#allocation8 + $0x60] sm:$0xff]
          %v1365 = vld [vmem:[#allocation8 + $0x68] sm:$0xff]
          %v1366 = vld [vmem:[#allocation8 + $0x70] sm:$0xff]
          %v1367 = vld [vmem:[#allocation8 + $0x78] sm:$0xff]
          %v1368 = vld [vmem:[#allocation8 + $0x80] sm:$0xff]
          %v1369 = vld [vmem:[#allocation8 + $0x88] sm:$0xff]
          %v1370 = vld [vmem:[#allocation8 + $0x90] sm:$0xff]
          %v1371 = vld [vmem:[#allocation8 + $0x98] sm:$0xff]
          %v1372 = vld [vmem:[#allocation8 + $0xa0] sm:$0xff]
          %v1373 = vld [vmem:[#allocation8 + $0xa8] sm:$0xff]
          %v1374 = vld [vmem:[#allocation8 + $0xb0] sm:$0xff]
          %v1375 = vld [vmem:[#allocation8 + $0xb8] sm:$0xff]
          %v1376 = vld [vmem:[#allocation8 + $0xc0] sm:$0xff]
          %v1377 = vld [vmem:[#allocation8 + $0xc8] sm:$0xff]
          %v1378 = vld [vmem:[#allocation8 + $0xd0] sm:$0xff]
          %v1379 = vld [vmem:[#allocation8 + $0xd8] sm:$0xff]
          %v1380 = vld [vmem:[#allocation8 + $0xe0] sm:$0xff]
          %v1381 = vld [vmem:[#allocation8 + $0xe8] sm:$0xff]
          %v1382 = vld [vmem:[#allocation8 + $0xf0] sm:$0xff]
          %v1383 = vld [vmem:[#allocation8 + $0xf8] sm:$0xff]
          %v1384 = vld [vmem:[#allocation8 + $0x100] sm:$0xff]
          %v1385 = vld [vmem:[#allocation8 + $0x108] sm:$0xff]
          %v1386 = vld [vmem:[#allocation8 + $0x110] sm:$0xff]
          %v1387 = vld [vmem:[#allocation8 + $0x118] sm:$0xff]
          %v1388 = vld [vmem:[#allocation8 + $0x120] sm:$0xff]
          %v1389 = vld [vmem:[#allocation8 + $0x128] sm:$0xff]
          %v1390 = vld [vmem:[#allocation8 + $0x130] sm:$0xff]
          %v1391 = vld [vmem:[#allocation8 + $0x138] sm:$0xff]
          %v1392 = vld [vmem:[#allocation8 + $0x140] sm:$0xff]
          %v1393 = vld [vmem:[#allocation8 + $0x148] sm:$0xff]
          %v1394 = vld [vmem:[#allocation8 + $0x150] sm:$0xff]
          %v1395 = vld [vmem:[#allocation8 + $0x158] sm:$0xff]
          %v1396 = vld [vmem:[#allocation8 + $0x160] sm:$0xff]
          %v1397 = vld [vmem:[#allocation8 + $0x168] sm:$0xff]
          %v1398 = vld [vmem:[#allocation8 + $0x170] sm:$0xff]
          %v1399 = vld [vmem:[#allocation8 + $0x178] sm:$0xff]
          %v1400 = vld [vmem:[#allocation8 + $0x180] sm:$0xff]
          %v1401 = vld [vmem:[#allocation8 + $0x188] sm:$0xff]
          %v1402 = vld [vmem:[#allocation8 + $0x190] sm:$0xff]
          %v1403 = vld [vmem:[#allocation8 + $0x198] sm:$0xff]
          %v1404 = vld [vmem:[#allocation8 + $0x1a0] sm:$0xff]
          %v1405 = vld [vmem:[#allocation8 + $0x1a8] sm:$0xff]
          %v1406 = vld [vmem:[#allocation8 + $0x1b0] sm:$0xff]
          %v1407 = vld [vmem:[#allocation8 + $0x1b8] sm:$0xff]
          %v1408 = vld [vmem:[#allocation8 + $0x1c0] sm:$0xff]
          %v1409 = vld [vmem:[#allocation8 + $0x1c8] sm:$0xff]
          %v1410 = vld [vmem:[#allocation8 + $0x1d0] sm:$0xff]
          %v1411 = vld [vmem:[#allocation8 + $0x1d8] sm:$0xff]
          %v1412 = vld [vmem:[#allocation8 + $0x1e0] sm:$0xff]
          %v1413 = vld [vmem:[#allocation8 + $0x1e8] sm:$0xff]
          %v1414 = vld [vmem:[#allocation8 + $0x1f0] sm:$0xff]
          %v1415 = vld [vmem:[#allocation8 + $0x1f8] sm:$0xff]
          %v1416 = vld [vmem:[%s4] sm:$0x3]
          %v1418 = vlaneseq
          %v1419 = vshrl.u32 %v1418, 7
          %v1420 = vsub.s32 0, %v1419
          %v1421 = vrot.slane %v1416, %v1420
          %v1422 = vlaneseq
          %v1423 = vshrl.u32 %v1422, 7
          %v1424 = vsub.s32 1, %v1423
          %v1425 = vrot.slane %v1416, %v1424
          %v1492 = vunpack.c.l.b16 %v1352
          %v1493 = vunpack.c.h.b16 %v1352
          %v1494 = vunpack.c.l.b16 %v1353
          %v1495 = vunpack.c.h.b16 %v1353
          %v1496 = vunpack.c.l.b16 %v1354
          %v1497 = vunpack.c.h.b16 %v1354
          %v1498 = vunpack.c.l.b16 %v1355
          %v1499 = vunpack.c.h.b16 %v1355
          %v1500 = vunpack.c.l.b16 %v1356
          %v1501 = vunpack.c.h.b16 %v1356
          %v1502 = vunpack.c.l.b16 %v1357
          %v1503 = vunpack.c.h.b16 %v1357
          %v1504 = vunpack.c.l.b16 %v1358
          %v1505 = vunpack.c.h.b16 %v1358
          %v1506 = vunpack.c.l.b16 %v1359
          %v1507 = vunpack.c.h.b16 %v1359
          %v1508 = vunpack.c.l.b16 %v1360
          %v1509 = vunpack.c.h.b16 %v1360
          %v1510 = vunpack.c.l.b16 %v1361
          %v1511 = vunpack.c.h.b16 %v1361
          %v1512 = vunpack.c.l.b16 %v1362
          %v1513 = vunpack.c.h.b16 %v1362
          %v1514 = vunpack.c.l.b16 %v1363
          %v1515 = vunpack.c.h.b16 %v1363
          %v1516 = vunpack.c.l.b16 %v1364
          %v1517 = vunpack.c.h.b16 %v1364
          %v1518 = vunpack.c.l.b16 %v1365
          %v1519 = vunpack.c.h.b16 %v1365
          %v1520 = vunpack.c.l.b16 %v1366
          %v1521 = vunpack.c.h.b16 %v1366
          %v1522 = vunpack.c.l.b16 %v1367
          %v1523 = vunpack.c.h.b16 %v1367
          %v1524 = vunpack.c.l.b16 %v1368
          %v1525 = vunpack.c.h.b16 %v1368
          %v1526 = vunpack.c.l.b16 %v1369
          %v1527 = vunpack.c.h.b16 %v1369
          %v1528 = vunpack.c.l.b16 %v1370
          %v1529 = vunpack.c.h.b16 %v1370
          %v1530 = vunpack.c.l.b16 %v1371
          %v1531 = vunpack.c.h.b16 %v1371
          %v1532 = vunpack.c.l.b16 %v1372
          %v1533 = vunpack.c.h.b16 %v1372
          %v1534 = vunpack.c.l.b16 %v1373
          %v1535 = vunpack.c.h.b16 %v1373
          %v1536 = vunpack.c.l.b16 %v1374
          %v1537 = vunpack.c.h.b16 %v1374
          %v1538 = vunpack.c.l.b16 %v1375
          %v1539 = vunpack.c.h.b16 %v1375
          %v1540 = vunpack.c.l.b16 %v1376
          %v1541 = vunpack.c.h.b16 %v1376
          %v1542 = vunpack.c.l.b16 %v1377
          %v1543 = vunpack.c.h.b16 %v1377
          %v1544 = vunpack.c.l.b16 %v1378
          %v1545 = vunpack.c.h.b16 %v1378
          %v1546 = vunpack.c.l.b16 %v1379
          %v1547 = vunpack.c.h.b16 %v1379
          %v1548 = vunpack.c.l.b16 %v1380
          %v1549 = vunpack.c.h.b16 %v1380
          %v1550 = vunpack.c.l.b16 %v1381
          %v1551 = vunpack.c.h.b16 %v1381
          %v1552 = vunpack.c.l.b16 %v1382
          %v1553 = vunpack.c.h.b16 %v1382
          %v1554 = vunpack.c.l.b16 %v1383
          %v1555 = vunpack.c.h.b16 %v1383
          %v1556 = vunpack.c.l.b16 %v1384
          %v1557 = vunpack.c.h.b16 %v1384
          %v1558 = vunpack.c.l.b16 %v1385
          %v1559 = vunpack.c.h.b16 %v1385
          %v1560 = vunpack.c.l.b16 %v1386
          %v1561 = vunpack.c.h.b16 %v1386
          %v1562 = vunpack.c.l.b16 %v1387
          %v1563 = vunpack.c.h.b16 %v1387
          %v1564 = vunpack.c.l.b16 %v1388
          %v1565 = vunpack.c.h.b16 %v1388
          %v1566 = vunpack.c.l.b16 %v1389
          %v1567 = vunpack.c.h.b16 %v1389
          %v1568 = vunpack.c.l.b16 %v1390
          %v1569 = vunpack.c.h.b16 %v1390
          %v1570 = vunpack.c.l.b16 %v1391
          %v1571 = vunpack.c.h.b16 %v1391
          %v1572 = vunpack.c.l.b16 %v1392
          %v1573 = vunpack.c.h.b16 %v1392
          %v1574 = vunpack.c.l.b16 %v1393
          %v1575 = vunpack.c.h.b16 %v1393
          %v1576 = vunpack.c.l.b16 %v1394
          %v1577 = vunpack.c.h.b16 %v1394
          %v1578 = vunpack.c.l.b16 %v1395
          %v1579 = vunpack.c.h.b16 %v1395
          %v1580 = vunpack.c.l.b16 %v1396
          %v1581 = vunpack.c.h.b16 %v1396
          %v1582 = vunpack.c.l.b16 %v1397
          %v1583 = vunpack.c.h.b16 %v1397
          %v1584 = vunpack.c.l.b16 %v1398
          %v1585 = vunpack.c.h.b16 %v1398
          %v1586 = vunpack.c.l.b16 %v1399
          %v1587 = vunpack.c.h.b16 %v1399
          %v1588 = vunpack.c.l.b16 %v1400
          %v1589 = vunpack.c.h.b16 %v1400
          %v1590 = vunpack.c.l.b16 %v1401
          %v1591 = vunpack.c.h.b16 %v1401
          %v1592 = vunpack.c.l.b16 %v1402
          %v1593 = vunpack.c.h.b16 %v1402
          %v1594 = vunpack.c.l.b16 %v1403
          %v1595 = vunpack.c.h.b16 %v1403
          %v1596 = vunpack.c.l.b16 %v1404
          %v1597 = vunpack.c.h.b16 %v1404
          %v1598 = vunpack.c.l.b16 %v1405
          %v1599 = vunpack.c.h.b16 %v1405
          %v1600 = vunpack.c.l.b16 %v1406
          %v1601 = vunpack.c.h.b16 %v1406
          %v1602 = vunpack.c.l.b16 %v1407
          %v1603 = vunpack.c.h.b16 %v1407
          %v1604 = vunpack.c.l.b16 %v1408
          %v1605 = vunpack.c.h.b16 %v1408
          %v1606 = vunpack.c.l.b16 %v1409
          %v1607 = vunpack.c.h.b16 %v1409
          %v1608 = vunpack.c.l.b16 %v1410
          %v1609 = vunpack.c.h.b16 %v1410
          %v1610 = vunpack.c.l.b16 %v1411
          %v1611 = vunpack.c.h.b16 %v1411
          %v1612 = vunpack.c.l.b16 %v1412
          %v1613 = vunpack.c.h.b16 %v1412
          %v1614 = vunpack.c.l.b16 %v1413
          %v1615 = vunpack.c.h.b16 %v1413
          %v1616 = vunpack.c.l.b16 %v1414
          %v1617 = vunpack.c.h.b16 %v1414
          %v1618 = vunpack.c.l.b16 %v1415
          %v1619 = vunpack.c.h.b16 %v1415
          %v1620 = vpack.c.b16 %v1494, %v1492
          %v1621 = vpack.c.b16 %v1495, %v1493
          %v1622 = vpack.c.b16 %v1498, %v1496
          %v1623 = vpack.c.b16 %v1499, %v1497
          %v1624 = vpack.c.b16 %v1502, %v1500
          %v1625 = vpack.c.b16 %v1503, %v1501
          %v1626 = vpack.c.b16 %v1506, %v1504
          %v1627 = vpack.c.b16 %v1507, %v1505
          %v1628 = vpack.c.b16 %v1510, %v1508
          %v1629 = vpack.c.b16 %v1511, %v1509
          %v1630 = vpack.c.b16 %v1514, %v1512
          %v1631 = vpack.c.b16 %v1515, %v1513
          %v1632 = vpack.c.b16 %v1518, %v1516
          %v1633 = vpack.c.b16 %v1519, %v1517
          %v1634 = vpack.c.b16 %v1522, %v1520
          %v1635 = vpack.c.b16 %v1523, %v1521
          %v1636 = vpack.c.b16 %v1526, %v1524
          %v1637 = vpack.c.b16 %v1527, %v1525
          %v1638 = vpack.c.b16 %v1530, %v1528
          %v1639 = vpack.c.b16 %v1531, %v1529
          %v1640 = vpack.c.b16 %v1534, %v1532
          %v1641 = vpack.c.b16 %v1535, %v1533
          %v1642 = vpack.c.b16 %v1538, %v1536
          %v1643 = vpack.c.b16 %v1539, %v1537
          %v1644 = vpack.c.b16 %v1542, %v1540
          %v1645 = vpack.c.b16 %v1543, %v1541
          %v1646 = vpack.c.b16 %v1546, %v1544
          %v1647 = vpack.c.b16 %v1547, %v1545
          %v1648 = vpack.c.b16 %v1550, %v1548
          %v1649 = vpack.c.b16 %v1551, %v1549
          %v1650 = vpack.c.b16 %v1554, %v1552
          %v1651 = vpack.c.b16 %v1555, %v1553
          %v1652 = vpack.c.b16 %v1558, %v1556
          %v1653 = vpack.c.b16 %v1559, %v1557
          %v1654 = vpack.c.b16 %v1562, %v1560
          %v1655 = vpack.c.b16 %v1563, %v1561
          %v1656 = vpack.c.b16 %v1566, %v1564
          %v1657 = vpack.c.b16 %v1567, %v1565
          %v1658 = vpack.c.b16 %v1570, %v1568
          %v1659 = vpack.c.b16 %v1571, %v1569
          %v1660 = vpack.c.b16 %v1574, %v1572
          %v1661 = vpack.c.b16 %v1575, %v1573
          %v1662 = vpack.c.b16 %v1578, %v1576
          %v1663 = vpack.c.b16 %v1579, %v1577
          %v1664 = vpack.c.b16 %v1582, %v1580
          %v1665 = vpack.c.b16 %v1583, %v1581
          %v1666 = vpack.c.b16 %v1586, %v1584
          %v1667 = vpack.c.b16 %v1587, %v1585
          %v1668 = vpack.c.b16 %v1590, %v1588
          %v1669 = vpack.c.b16 %v1591, %v1589
          %v1670 = vpack.c.b16 %v1594, %v1592
          %v1671 = vpack.c.b16 %v1595, %v1593
          %v1672 = vpack.c.b16 %v1598, %v1596
          %v1673 = vpack.c.b16 %v1599, %v1597
          %v1674 = vpack.c.b16 %v1602, %v1600
          %v1675 = vpack.c.b16 %v1603, %v1601
          %v1676 = vpack.c.b16 %v1606, %v1604
          %v1677 = vpack.c.b16 %v1607, %v1605
          %v1678 = vpack.c.b16 %v1610, %v1608
          %v1679 = vpack.c.b16 %v1611, %v1609
          %v1680 = vpack.c.b16 %v1614, %v1612
          %v1681 = vpack.c.b16 %v1615, %v1613
          %v1682 = vpack.c.b16 %v1618, %v1616
          %v1683 = vpack.c.b16 %v1619, %v1617
          %1748 = vmatprep.subr.bf16.mxu0 %v1621
          %1749 = vmatpush1.bf16.msra.mxu0 %v1620
          %1750 = vmatprep.subr.bf16.mxu0 %v1623
          %1751 = vmatpush1.bf16.msra.mxu0 %v1622
          %1752 = vmatprep.subr.bf16.mxu0 %v1625
          %1753 = vmatpush1.bf16.msra.mxu0 %v1624
          %1754 = vmatprep.subr.bf16.mxu0 %v1627
          %1755 = vmatpush1.bf16.msra.mxu0 %v1626
          %1756 = vmatprep.subr.bf16.mxu0 %v1629
          %1757 = vmatpush1.bf16.msra.mxu0 %v1628
          %1758 = vmatprep.subr.bf16.mxu0 %v1631
          %1759 = vmatpush1.bf16.msra.mxu0 %v1630
          %1760 = vmatprep.subr.bf16.mxu0 %v1633
          %1761 = vmatpush1.bf16.msra.mxu0 %v1632
          %1762 = vmatprep.subr.bf16.mxu0 %v1635
          %1763 = vmatpush1.bf16.msra.mxu0 %v1634
          %1764 = vmatprep.subr.bf16.mxu0 %v1637
          %1765 = vmatpush1.bf16.msra.mxu0 %v1636
          %1766 = vmatprep.subr.bf16.mxu0 %v1639
          %1767 = vmatpush1.bf16.msra.mxu0 %v1638
          %1768 = vmatprep.subr.bf16.mxu0 %v1641
          %1769 = vmatpush1.bf16.msra.mxu0 %v1640
          %1770 = vmatprep.subr.bf16.mxu0 %v1643
          %1771 = vmatpush1.bf16.msra.mxu0 %v1642
          %1772 = vmatprep.subr.bf16.mxu0 %v1645
          %1773 = vmatpush1.bf16.msra.mxu0 %v1644
          %1774 = vmatprep.subr.bf16.mxu0 %v1647
          %1775 = vmatpush1.bf16.msra.mxu0 %v1646
          %1776 = vmatprep.subr.bf16.mxu0 %v1649
          %1777 = vmatpush1.bf16.msra.mxu0 %v1648
          %1778 = vmatprep.subr.bf16.mxu0 %v1651
          %1779 = vmatpush1.bf16.msra.mxu0 %v1650
          %1780 = vmatprep.mubr.bf16.mxu0 %v1349
          %1781 = vmatmul.mubr.bf16.gmra.mrb[0].mxu0 %v1348
          %v1782 = vpop.f32.mrb[0].mxu0
          %v1783 = vadd.f32 %v1421, %v1782
          %v1784 = vpop.f32.mrb[0].mxu0
          %v1785 = vadd.f32 %v1425, %v1784
          %v1786 = vpop.f32.mrb[0].mxu0
          %v1787 = vpop.f32.mrb[0].mxu0
          %1788 = vdwg.mxu0
          %1789 = vmatprep.subr.bf16.mxu0 %v1653
          %1790 = vmatpush1.bf16.msra.mxu0 %v1652
          %1791 = vmatprep.subr.bf16.mxu0 %v1655
          %1792 = vmatpush1.bf16.msra.mxu0 %v1654
          %1793 = vmatprep.subr.bf16.mxu0 %v1657
          %1794 = vmatpush1.bf16.msra.mxu0 %v1656
          %1795 = vmatprep.subr.bf16.mxu0 %v1659
          %1796 = vmatpush1.bf16.msra.mxu0 %v1658
          %1797 = vmatprep.subr.bf16.mxu0 %v1661
          %1798 = vmatpush1.bf16.msra.mxu0 %v1660
          %1799 = vmatprep.subr.bf16.mxu0 %v1663
          %1800 = vmatpush1.bf16.msra.mxu0 %v1662
          %1801 = vmatprep.subr.bf16.mxu0 %v1665
          %1802 = vmatpush1.bf16.msra.mxu0 %v1664
          %1803 = vmatprep.subr.bf16.mxu0 %v1667
          %1804 = vmatpush1.bf16.msra.mxu0 %v1666
          %1805 = vmatprep.subr.bf16.mxu0 %v1669
          %1806 = vmatpush1.bf16.msra.mxu0 %v1668
          %1807 = vmatprep.subr.bf16.mxu0 %v1671
          %1808 = vmatpush1.bf16.msra.mxu0 %v1670
          %1809 = vmatprep.subr.bf16.mxu0 %v1673
          %1810 = vmatpush1.bf16.msra.mxu0 %v1672
          %1811 = vmatprep.subr.bf16.mxu0 %v1675
          %1812 = vmatpush1.bf16.msra.mxu0 %v1674
          %1813 = vmatprep.subr.bf16.mxu0 %v1677
          %1814 = vmatpush1.bf16.msra.mxu0 %v1676
          %1815 = vmatprep.subr.bf16.mxu0 %v1679
          %1816 = vmatpush1.bf16.msra.mxu0 %v1678
          %1817 = vmatprep.subr.bf16.mxu0 %v1681
          %1818 = vmatpush1.bf16.msra.mxu0 %v1680
          %1819 = vmatprep.subr.bf16.mxu0 %v1683
          %1820 = vmatpush1.bf16.msra.mxu0 %v1682
          %1821 = vmatprep.mubr.bf16.mxu0 %v1351
          %1822 = vmatmul.mubr.bf16.gmra.mrb[0].mxu0 %v1350
          %v1823 = vpop.f32.mrb[0].mxu0
          %v1824 = vadd.f32 %v1783, %v1823
          %v1825 = vpop.f32.mrb[0].mxu0
          %v1826 = vadd.f32 %v1785, %v1825
          %v1827 = vpop.f32.mrb[0].mxu0
          %v1828 = vpop.f32.mrb[0].mxu0
          %1829 = vdwg.mxu0
          %v1830 = vmul.f32 %v1824, 0.2
          %v1831 = vmul.f32 %v1826, 0.2
          %v1832 = vmax.f32 %v1824, %v1830
          %v1833 = vmax.f32 %v1826, %v1831
          %v1834 = vpack.c.bf16 %v1832, %v1832
          %v1835 = vpack.c.bf16 %v1833, %v1833
          %v1836 = vld [vmem:[#allocation9] sm:$0xf]
          %v1837 = vld [vmem:[#allocation9 + $0x4] sm:$0xf]
          %v1838 = vld [vmem:[#allocation9 + $0x8] sm:$0xf]
          %v1839 = vld [vmem:[#allocation9 + $0xc] sm:$0xf]
          %v1840 = vld [vmem:[#allocation9 + $0x10] sm:$0xf]
          %v1841 = vld [vmem:[#allocation9 + $0x14] sm:$0xf]
          %v1842 = vld [vmem:[#allocation9 + $0x18] sm:$0xf]
          %v1843 = vld [vmem:[#allocation9 + $0x1c] sm:$0xf]
          %v1844 = vld [vmem:[#allocation9 + $0x20] sm:$0xf]
          %v1845 = vld [vmem:[#allocation9 + $0x24] sm:$0xf]
          %v1846 = vld [vmem:[#allocation9 + $0x28] sm:$0xf]
          %v1847 = vld [vmem:[#allocation9 + $0x2c] sm:$0xf]
          %v1848 = vld [vmem:[#allocation9 + $0x30] sm:$0xf]
          %v1849 = vld [vmem:[#allocation9 + $0x34] sm:$0xf]
          %v1850 = vld [vmem:[#allocation9 + $0x38] sm:$0xf]
          %v1851 = vld [vmem:[#allocation9 + $0x3c] sm:$0xf]
          %v1852 = vld [vmem:[#allocation9 + $0x40] sm:$0xf]
          %v1853 = vld [vmem:[#allocation9 + $0x44] sm:$0xf]
          %v1854 = vld [vmem:[#allocation9 + $0x48] sm:$0xf]
          %v1855 = vld [vmem:[#allocation9 + $0x4c] sm:$0xf]
          %v1856 = vld [vmem:[#allocation9 + $0x50] sm:$0xf]
          %v1857 = vld [vmem:[#allocation9 + $0x54] sm:$0xf]
          %v1858 = vld [vmem:[#allocation9 + $0x58] sm:$0xf]
          %v1859 = vld [vmem:[#allocation9 + $0x5c] sm:$0xf]
          %v1860 = vld [vmem:[#allocation9 + $0x60] sm:$0xf]
          %v1861 = vld [vmem:[#allocation9 + $0x64] sm:$0xf]
          %v1862 = vld [vmem:[#allocation9 + $0x68] sm:$0xf]
          %v1863 = vld [vmem:[#allocation9 + $0x6c] sm:$0xf]
          %v1864 = vld [vmem:[#allocation9 + $0x70] sm:$0xf]
          %v1865 = vld [vmem:[#allocation9 + $0x74] sm:$0xf]
          %v1866 = vld [vmem:[#allocation9 + $0x78] sm:$0xf]
          %v1867 = vld [vmem:[#allocation9 + $0x7c] sm:$0xf]
          %v1900 = vunpack.c.l.b16 %v1836
          %v1901 = vunpack.c.l.b16 %v1837
          %v1902 = vunpack.c.l.b16 %v1838
          %v1903 = vunpack.c.l.b16 %v1839
          %v1904 = vunpack.c.l.b16 %v1840
          %v1905 = vunpack.c.l.b16 %v1841
          %v1906 = vunpack.c.l.b16 %v1842
          %v1907 = vunpack.c.l.b16 %v1843
          %v1908 = vunpack.c.l.b16 %v1844
          %v1909 = vunpack.c.l.b16 %v1845
          %v1910 = vunpack.c.l.b16 %v1846
          %v1911 = vunpack.c.l.b16 %v1847
          %v1912 = vunpack.c.l.b16 %v1848
          %v1913 = vunpack.c.l.b16 %v1849
          %v1914 = vunpack.c.l.b16 %v1850
          %v1915 = vunpack.c.l.b16 %v1851
          %v1916 = vunpack.c.l.b16 %v1852
          %v1917 = vunpack.c.l.b16 %v1853
          %v1918 = vunpack.c.l.b16 %v1854
          %v1919 = vunpack.c.l.b16 %v1855
          %v1920 = vunpack.c.l.b16 %v1856
          %v1921 = vunpack.c.l.b16 %v1857
          %v1922 = vunpack.c.l.b16 %v1858
          %v1923 = vunpack.c.l.b16 %v1859
          %v1924 = vunpack.c.l.b16 %v1860
          %v1925 = vunpack.c.l.b16 %v1861
          %v1926 = vunpack.c.l.b16 %v1862
          %v1927 = vunpack.c.l.b16 %v1863
          %v1928 = vunpack.c.l.b16 %v1864
          %v1929 = vunpack.c.l.b16 %v1865
          %v1930 = vunpack.c.l.b16 %v1866
          %v1931 = vunpack.c.l.b16 %v1867
          %v1932 = vpack.c.b16 %v1901, %v1900
          %v1933 = vpack.c.b16 %v1903, %v1902
          %v1934 = vpack.c.b16 %v1905, %v1904
          %v1935 = vpack.c.b16 %v1907, %v1906
          %v1936 = vpack.c.b16 %v1909, %v1908
          %v1937 = vpack.c.b16 %v1911, %v1910
          %v1938 = vpack.c.b16 %v1913, %v1912
          %v1939 = vpack.c.b16 %v1915, %v1914
          %v1940 = vpack.c.b16 %v1917, %v1916
          %v1941 = vpack.c.b16 %v1919, %v1918
          %v1942 = vpack.c.b16 %v1921, %v1920
          %v1943 = vpack.c.b16 %v1923, %v1922
          %v1944 = vpack.c.b16 %v1925, %v1924
          %v1945 = vpack.c.b16 %v1927, %v1926
          %v1946 = vpack.c.b16 %v1929, %v1928
          %v1947 = vpack.c.b16 %v1931, %v1930
          %1964 = vmatprep.subr.bf16.mxu0 0
          %1965 = vmatpush1.bf16.msra.mxu0 %v1932
          %1966 = vmatprep.subr.bf16.mxu0 0
          %1967 = vmatpush1.bf16.msra.mxu0 %v1933
          %1968 = vmatprep.subr.bf16.mxu0 0
          %1969 = vmatpush1.bf16.msra.mxu0 %v1934
          %1970 = vmatprep.subr.bf16.mxu0 0
          %1971 = vmatpush1.bf16.msra.mxu0 %v1935
          %1972 = vmatprep.subr.bf16.mxu0 0
          %1973 = vmatpush1.bf16.msra.mxu0 %v1936
          %1974 = vmatprep.subr.bf16.mxu0 0
          %1975 = vmatpush1.bf16.msra.mxu0 %v1937
          %1976 = vmatprep.subr.bf16.mxu0 0
          %1977 = vmatpush1.bf16.msra.mxu0 %v1938
          %1978 = vmatprep.subr.bf16.mxu0 0
          %1979 = vmatpush1.bf16.msra.mxu0 %v1939
          %1980 = vmatprep.subr.bf16.mxu0 0
          %1981 = vmatpush1.bf16.msra.mxu0 %v1940
          %1982 = vmatprep.subr.bf16.mxu0 0
          %1983 = vmatpush1.bf16.msra.mxu0 %v1941
          %1984 = vmatprep.subr.bf16.mxu0 0
          %1985 = vmatpush1.bf16.msra.mxu0 %v1942
          %1986 = vmatprep.subr.bf16.mxu0 0
          %1987 = vmatpush1.bf16.msra.mxu0 %v1943
          %1988 = vmatprep.subr.bf16.mxu0 0
          %1989 = vmatpush1.bf16.msra.mxu0 %v1944
          %1990 = vmatprep.subr.bf16.mxu0 0
          %1991 = vmatpush1.bf16.msra.mxu0 %v1945
          %1992 = vmatprep.subr.bf16.mxu0 0
          %1993 = vmatpush1.bf16.msra.mxu0 %v1946
          %1994 = vmatprep.subr.bf16.mxu0 0
          %1995 = vmatpush1.bf16.msra.mxu0 %v1947
          %1996 = vmatprep.mubr.bf16.mxu0 %v1835
          %1997 = vmatmul.mubr.bf16.gmra.mrb[0].mxu0 %v1834
          %v1998 = vpop.f32.mrb[0].mxu0
          %v1999 = vadd.f32 0.0, %v1998
          %v2000 = vpop.f32.mrb[0].mxu0
          %v2001 = vpop.f32.mrb[0].mxu0
          %v2002 = vpop.f32.mrb[0].mxu0
          %2003 = vdwg.mxu0
          %2004 = vst [vmem:[#allocation11] sm:$0xff] %v1999
        $region68: #{tpu_custom_call.1} parent=43 // pred_fallthru
          _
        // Predicated region
        $region69: #{tpu_custom_call.1} parent=43 // pred_check
          %p2005 = pneg %p193
        $region70: #{tpu_custom_call.1} parent=43 // pred_check_branch
          %2007 = sbr.rel (%p2005) target = $region72
        $region71: #{tpu_custom_call.1} parent=43 // pred_region
          %s2009 = ssub.s32 128, 128
          %2010 = vsyncadd [#allocation5], %s2009
          %s2011 = smul.addr %s29, 128
          %s2012 = scalar_lea.hbm %s6, %s2011
          %s2014 = sshll.u32 [#allocation11], 4
          %s2015 = int_to_ptr.vmem [resolvable:$true] %s2014
          %2017 = dma.vmem_to_hbm [thread:$0]  %s2015, 128, %s2012, [#allocation5]
        $region72: #{tpu_custom_call.1} parent=43 // pred_fallthru
          _
        // Predicated region
        $region73: #{tpu_custom_call.1} parent=43 // pred_check
          %p2018 = pneg %p193
        $region74: #{tpu_custom_call.1} parent=43 // pred_check_branch
          %2020 = sbr.rel (%p2018) target = $region76
        $region75: #{tpu_custom_call.1} parent=43 // pred_region
          %2021 = dma.done [#allocation5], 128
        $region76: #{tpu_custom_call.1} parent=43 // pred_fallthru
          _
      $region44: #{tpu_custom_call.1} parent=5 // pred_fallthru
        _
      %p2022 = scmp.le.s32.totalorder 2, %s20
      // Predicated region
      $region77: #{tpu_custom_call.1} parent=5 // pred_check
        %p2023 = pneg %p2022
      $region78: #{tpu_custom_call.1} parent=5 // pred_check_branch
        %2025 = sbr.rel (%p2023) target = $region80
      $region79: #{tpu_custom_call.1} parent=5 // pred_region
        %s2026 = ssub.s32 %s20, 2
      $region80: #{tpu_custom_call.1} parent=5 // pred_fallthru
        _
    $region6: #{tpu_custom_call.1} parent=1 // loop_footer
      %s24 = sadd.s32 1, %s20
    $region7: #{tpu_custom_call.1} parent=1 // loop_footer_branch
      %19 = sbr.rel target = $region3
    $region8: #{tpu_custom_call.1} parent=1 // loop_exit
      _
    %2027 = vsyncpa [#allocation4], 1
    %s2028 = scalar_lea.sflag [#allocation4], 1
    %2029 = vsyncpa %s2028, 1
    %2030 = vsyncpa [#allocation7], 1
    %s2031 = scalar_lea.sflag [#allocation7], 1
    %2032 = vsyncpa %s2031, 1
    %2033 = vsyncpa [#allocation10], 1
    %2034 = vsyncpa [#allocation5], 1
    %s2035 = scalar_lea.sflag [#allocation5], 1
    %2036 = vsyncpa %s2035, 1

</llo_original>
